<compile_context>
chip_gen: v5e
topology: v5e:2x2
jax: 0.10.0
libtpu: 0.0.40
codegen_flags: <defaults>
</compile_context>

<pallas_src>
import functools

import jax
import jax.numpy as jnp
from jax import lax
from jax.experimental import pallas as pl
from jax.experimental.pallas import tpu as pltpu


def _round_up(x, m):
    return ((x + m - 1) // m) * m


def _rms_norm(x, gamma, eps):
    # Reference-only helper (kernel folds gamma into the following weights).
    ms = jnp.mean(x * x, axis=-1, keepdims=True)
    return x * lax.rsqrt(ms + eps) * gamma


def _const_spec(shape):
    """BlockSpec for grid-invariant weights (same block every step -> fetched once)."""
    zeros = (0,) * len(shape)
    return pl.BlockSpec(shape, lambda b, n: zeros)


# ---------------------------------------------------------------------------
# Fused kernel: kv-proj (once per batch) -> norm1 -> attention -> proj -> +res
#               -> norm2 -> MLP -> +res, for one (batch, query-tile) grid point.
# ---------------------------------------------------------------------------
def _block_kernel(tgt_ref, mem_ref, wkv_ref, bkv_ref, wq_ref, bq_ref,
                  wp_ref, bp_ref, w1_ref, b1_ref, w2_ref, b2_ref,
                  out_ref, k_scr, v_scr, q_scr, attn_scr, *,
                  num_heads, eps):
    f32, bf16 = jnp.float32, jnp.bfloat16
    C = out_ref.shape[-1]
    D = C // num_heads

    # ---- K / V projection: once per batch (query-tile axis is "arbitrary",
    #      so program_id(1) == 0 runs first and the scratch persists). ----
    @pl.when(pl.program_id(1) == 0)
    def _():
        kv = jnp.dot(mem_ref[...], wkv_ref[...],
                     preferred_element_type=f32) + bkv_ref[...]          # (M, 2C) f32
        k_scr[...] = kv[:, :C].astype(bf16)                              # (M, C) bf16
        v_scr[...] = kv[:, C:].astype(bf16)                              # (M, C) bf16

    # ---- RMSNorm1 (gamma folded into wq) + full-width Q projection ----
    tgt = tgt_ref[...].astype(f32)                                       # (TN, C)
    ms = jnp.mean(tgt * tgt, axis=-1, keepdims=True)
    xn = (tgt * lax.rsqrt(ms + eps)).astype(bf16)
    q_scr[...] = (jnp.dot(xn, wq_ref[...], preferred_element_type=f32)
                  + bq_ref[...]).astype(bf16)                            # (TN, C) bf16

    # ---- per-head attention (static lane slices; outputs staged in VMEM) ----
    for h in range(num_heads):
        lo = h * D
        q_h = q_scr[:, lo:lo + D]                                        # (TN, D) bf16
        k_h = k_scr[:, lo:lo + D]                                        # (M, D)  bf16
        # scores contract the last dims of both operands -> no K transpose.
        s = lax.dot_general(q_h, k_h, (((1,), (1,)), ((), ())),
                            preferred_element_type=f32)                  # (TN, M) f32
        s = s - jnp.max(s, axis=-1, keepdims=True)
        p = jnp.exp(s)                                                   # unnormalized probs
        o = jnp.dot(p.astype(bf16), v_scr[:, lo:lo + D],
                    preferred_element_type=f32)                          # (TN, D) f32
        # normalize the small (TN, D) output instead of the (TN, M) probs
        o = o * pl.reciprocal(jnp.sum(p, axis=-1, keepdims=True), approx=False)
        attn_scr[:, lo:lo + D] = o.astype(bf16)

    # ---- full-width output projection + residual 1 ----
    x = (tgt_ref[...].astype(f32)
         + jnp.dot(attn_scr[...], wp_ref[...], preferred_element_type=f32)
         + bp_ref[...])                                                  # (TN, C) f32

    # ---- RMSNorm2 (gamma folded into w1) + MLP + residual 2 ----
    ms2 = jnp.mean(x * x, axis=-1, keepdims=True)
    xn2 = (x * lax.rsqrt(ms2 + eps)).astype(bf16)
    h1 = jnp.dot(xn2, w1_ref[...], preferred_element_type=f32) + b1_ref[...]
    # TODO(synk): PyTorch nn.GELU defaults to the exact erf form; tanh approximation used here.
    h1 = jax.nn.gelu(h1, approximate=True)
    y = jnp.dot(h1.astype(bf16), w2_ref[...], preferred_element_type=f32) + b2_ref[...]

    out_ref[...] = (x + y).astype(out_ref.dtype)


# ---------------------------------------------------------------------------
# Wrapper
# ---------------------------------------------------------------------------
def cross_attention_block(tgt, memory, params, *, num_heads, eps=1e-5,
                          tile_n=128, vmem_limit_bytes=None):
    B, N, C = tgt.shape
    _, M, E = memory.shape
    H = num_heads
    D = C // H
    scale = float(D) ** -0.5
    hidden = params["w1"].shape[1]
    f32, bf16 = jnp.float32, jnp.bfloat16

    # One-time weight prep (XLA side, outside the kernel):
    #   * attention scale and RMSNorm-1 gamma folded into wq / bq,
    #   * RMSNorm-2 gamma folded into w1,
    #   * fused kv weight kept fused -> one full-width (M,E)@(E,2C) matmul,
    #   * all matmul operands in bf16 (f32 accumulation in-kernel).
    g1 = params["g1"].astype(f32)                    # (1, C)
    g2 = params["g2"].astype(f32)                    # (1, C)
    wq = (params["wq"] * scale * g1.T).astype(bf16)  # (C, C)
    bq = (params["bq"] * scale).astype(f32)          # (1, C)
    wkv = params["wkv"].astype(bf16)                 # (E, 2C)
    bkv = params["bkv"].astype(f32)                  # (1, 2C)
    wp = params["wp"].astype(bf16)                   # (C, C)
    bp = params["bp"].astype(f32)                    # (1, C)
    w1 = (params["w1"] * g2.T).astype(bf16)          # (C, hidden)
    b1 = params["b1"].astype(f32)                    # (1, hidden)
    w2 = params["w2"].astype(bf16)                   # (hidden, C)
    b2 = params["b2"].astype(f32)                    # (1, C)

    mem_bf16 = memory.astype(bf16)                   # halve the largest input DMA

    tn = min(tile_n, _round_up(N, 8))
    nt = pl.cdiv(N, tn)

    kernel = functools.partial(_block_kernel, num_heads=H, eps=eps)
    out = pl.pallas_call(
        kernel,
        out_shape=jax.ShapeDtypeStruct((B, N, C), tgt.dtype),
        grid_spec=pltpu.PrefetchScalarGridSpec(
            num_scalar_prefetch=0,
            grid=(B, nt),
            in_specs=[
                pl.BlockSpec((None, tn, C), lambda b, n: (b, n, 0)),   # tgt tile
                pl.BlockSpec((None, M, E), lambda b, n: (b, 0, 0)),    # memory (per batch)
                _const_spec((E, 2 * C)),       # wkv (fused)
                _const_spec((1, 2 * C)),       # bkv
                _const_spec((C, C)),           # wq (scale + gamma1 folded)
                _const_spec((1, C)),           # bq (scaled)
                _const_spec((C, C)),           # wp
                _const_spec((1, C)),           # bp
                _const_spec((C, hidden)),      # w1 (gamma2 folded)
                _const_spec((1, hidden)),      # b1
                _const_spec((hidden, C)),      # w2
                _const_spec((1, C)),           # b2
            ],
            out_specs=pl.BlockSpec((None, tn, C), lambda b, n: (b, n, 0)),
            scratch_shapes=[
                pltpu.VMEM((M, C), bf16),      # K  (features in lanes)
                pltpu.VMEM((M, C), bf16),      # V  (features in lanes)
                pltpu.VMEM((tn, C), bf16),     # Q  staging
                pltpu.VMEM((tn, C), bf16),     # attention output staging
            ],
        ),
        compiler_params=pltpu.CompilerParams(
            dimension_semantics=("parallel", "arbitrary"),
            vmem_limit_bytes=vmem_limit_bytes),
    )(tgt, mem_bf16, wkv, bkv, wq, bq, wp, bp, w1, b1, w2, b2)
    return out


# ---------------------------------------------------------------------------
# Pure-JAX reference mirroring the PyTorch CrossAttentionBlock forward (f32).
# ---------------------------------------------------------------------------
def _reference(tgt, memory, params, *, num_heads, eps=1e-5):
    B, N, C = tgt.shape
    M = memory.shape[1]
    D = C // num_heads

    xn = _rms_norm(tgt, params["g1"], eps)
    q = xn @ params["wq"] + params["bq"][0]
    kv = memory @ params["wkv"] + params["bkv"][0]
    k, v = kv[..., :C], kv[..., C:]
    q = q.reshape(B, N, num_heads, D).transpose(0, 2, 1, 3)
    k = k.reshape(B, M, num_heads, D).transpose(0, 2, 1, 3)
    v = v.reshape(B, M, num_heads, D).transpose(0, 2, 1, 3)
    s = jnp.einsum("bhnd,bhmd->bhnm", q, k) * (D ** -0.5)
    p = jax.nn.softmax(s, axis=-1)
    o = jnp.einsum("bhnm,bhmd->bhnd", p, v)
    o = o.transpose(0, 2, 1, 3).reshape(B, N, C)
    x = tgt + (o @ params["wp"] + params["bp"][0])

    xn2 = _rms_norm(x, params["g2"], eps)
    h = jax.nn.gelu(xn2 @ params["w1"] + params["b1"][0], approximate=True)
    return x + h @ params["w2"] + params["b2"][0]


if __name__ == "__main__":
    # Small shapes consistent with the module's forward.
    B, N, M = 2, 8, 16
    encoder_dim, decoder_dim, num_heads = 48, 32, 4
    mlp_ratio = 4.0
    hidden = int(decoder_dim * mlp_ratio)

    key = jax.random.PRNGKey(0)
    ks = jax.random.split(key, 16)

    tgt = jax.random.normal(ks[0], (B, N, decoder_dim), jnp.float32)
    memory = jax.random.normal(ks[1], (B, M, encoder_dim), jnp.float32)

    params = {
        "g1": 1.0 + 0.1 * jax.random.normal(ks[2], (1, decoder_dim), jnp.float32),
        "wq": 0.1 * jax.random.normal(ks[3], (decoder_dim, decoder_dim), jnp.float32),
        "bq": 0.1 * jax.random.normal(ks[4], (1, decoder_dim), jnp.float32),
        "wkv": 0.1 * jax.random.normal(ks[5], (encoder_dim, 2 * decoder_dim), jnp.float32),
        "bkv": 0.1 * jax.random.normal(ks[6], (1, 2 * decoder_dim), jnp.float32),
        "wp": 0.1 * jax.random.normal(ks[7], (decoder_dim, decoder_dim), jnp.float32),
        "bp": 0.1 * jax.random.normal(ks[8], (1, decoder_dim), jnp.float32),
        "g2": 1.0 + 0.1 * jax.random.normal(ks[9], (1, decoder_dim), jnp.float32),
        "w1": 0.1 * jax.random.normal(ks[10], (decoder_dim, hidden), jnp.float32),
        "b1": 0.1 * jax.random.normal(ks[11], (1, hidden), jnp.float32),
        "w2": 0.1 * jax.random.normal(ks[12], (hidden, decoder_dim), jnp.float32),
        "b2": 0.1 * jax.random.normal(ks[13], (1, decoder_dim), jnp.float32),
    }

    out = cross_attention_block(tgt, memory, params, num_heads=num_heads)
    out = jax.block_until_ready(out)

    ref = _reference(tgt, memory, params, num_heads=num_heads)
    assert out.shape == (B, N, decoder_dim)
    max_err = float(jnp.max(jnp.abs(out - ref)))
    # bf16 MXU operands -> bf16-level tolerance vs the f32 reference.
    assert jnp.allclose(out, ref, atol=3e-2, rtol=3e-2), f"mismatch vs reference (max abs err {max_err})"

    print("KERNEL_OK")
</pallas_src>

<mosaic_0001>
module attributes {stable_mosaic.version = 11 : i64} {
  func.func @_block_kernel(%arg0: i32, %arg1: i32, %arg2: memref<1x8x32xf32, #tpu.memory_space<vmem>>, %arg3: memref<1x16x48xbf16, #tpu.memory_space<vmem>>, %arg4: memref<48x64xbf16, #tpu.memory_space<vmem>>, %arg5: memref<1x64xf32, #tpu.memory_space<vmem>>, %arg6: memref<32x32xbf16, #tpu.memory_space<vmem>>, %arg7: memref<1x32xf32, #tpu.memory_space<vmem>>, %arg8: memref<32x32xbf16, #tpu.memory_space<vmem>>, %arg9: memref<1x32xf32, #tpu.memory_space<vmem>>, %arg10: memref<32x128xbf16, #tpu.memory_space<vmem>>, %arg11: memref<1x128xf32, #tpu.memory_space<vmem>>, %arg12: memref<128x32xbf16, #tpu.memory_space<vmem>>, %arg13: memref<1x32xf32, #tpu.memory_space<vmem>>, %arg14: memref<1x8x32xf32, #tpu.memory_space<vmem>>, %arg15: memref<16x32xbf16, #tpu.memory_space<vmem>>, %arg16: memref<16x32xbf16, #tpu.memory_space<vmem>>, %arg17: memref<8x32xbf16, #tpu.memory_space<vmem>>, %arg18: memref<8x32xbf16, #tpu.memory_space<vmem>>) attributes {dimension_semantics = [#tpu.dimension_semantics<parallel>, #tpu.dimension_semantics<arbitrary>], iteration_bounds = array<i64: 2, 1>, scalar_prefetch = 0 : i64, scratch_operands = 4 : i64, tpu.core_type = #tpu.core_type<tc>, window_params = [{transform_indices = @transform_0, window_bounds = array<i64: 1, 8, 32>}, {transform_indices = @transform_1, window_bounds = array<i64: 1, 16, 48>}, {pipeline_mode = #tpu.pipeline_mode<synchronous>, transform_indices = @transform_2, window_bounds = array<i64: 48, 64>}, {pipeline_mode = #tpu.pipeline_mode<synchronous>, transform_indices = @transform_3, window_bounds = array<i64: 1, 64>}, {pipeline_mode = #tpu.pipeline_mode<synchronous>, transform_indices = @transform_4, window_bounds = array<i64: 32, 32>}, {pipeline_mode = #tpu.pipeline_mode<synchronous>, transform_indices = @transform_5, window_bounds = array<i64: 1, 32>}, {pipeline_mode = #tpu.pipeline_mode<synchronous>, transform_indices = @transform_6, window_bounds = array<i64: 32, 32>}, {pipeline_mode = #tpu.pipeline_mode<synchronous>, transform_indices = @transform_7, window_bounds = array<i64: 1, 32>}, {pipeline_mode = #tpu.pipeline_mode<synchronous>, transform_indices = @transform_8, window_bounds = array<i64: 32, 128>}, {pipeline_mode = #tpu.pipeline_mode<synchronous>, transform_indices = @transform_9, window_bounds = array<i64: 1, 128>}, {pipeline_mode = #tpu.pipeline_mode<synchronous>, transform_indices = @transform_10, window_bounds = array<i64: 128, 32>}, {pipeline_mode = #tpu.pipeline_mode<synchronous>, transform_indices = @transform_11, window_bounds = array<i64: 1, 32>}, {transform_indices = @transform_12, window_bounds = array<i64: 1, 8, 32>}]} {
    %c0_i32 = arith.constant 0 : i32
    %0 = arith.cmpi eq, %arg1, %c0_i32 : i32
    %1 = arith.extui %0 : i1 to i32
    %c0_i32_0 = arith.constant 0 : i32
    %2 = arith.cmpi ne, %1, %c0_i32_0 : i32
    scf.if %2 {
      %c0_87 = arith.constant 0 : index
      %c0_88 = arith.constant 0 : index
      %c0_89 = arith.constant 0 : index
      %143 = vector.load %arg3[%c0_87, %c0_88, %c0_89] : memref<1x16x48xbf16, #tpu.memory_space<vmem>>, vector<1x16x48xbf16>
      %144 = vector.shape_cast %143 : vector<1x16x48xbf16> to vector<16x48xbf16>
      %c0_90 = arith.constant 0 : index
      %c0_91 = arith.constant 0 : index
      %145 = vector.load %arg4[%c0_90, %c0_91] : memref<48x64xbf16, #tpu.memory_space<vmem>>, vector<48x64xbf16>
      %cst_92 = arith.constant dense<0.000000e+00> : vector<16x64xf32>
      %146 = tpu.matmul %144, %145, %cst_92 {dimension_numbers = #tpu.dot_dimension_numbers<[1], [0], [0], [1], [0, 0, 1, 1], [], []>} : vector<16x48xbf16>, vector<48x64xbf16>, vector<16x64xf32> -> vector<16x64xf32>
      %c0_93 = arith.constant 0 : index
      %c0_94 = arith.constant 0 : index
      %147 = vector.load %arg5[%c0_93, %c0_94] : memref<1x64xf32, #tpu.memory_space<vmem>>, vector<1x64xf32>
      %148 = vector.broadcast %147 : vector<1x64xf32> to vector<16x64xf32>
      %149 = arith.addf %146, %148 : vector<16x64xf32>
      %150 = vector.extract_strided_slice %149 {offsets = [0, 0], sizes = [16, 32], strides = [1, 1]} : vector<16x64xf32> to vector<16x32xf32>
      %151 = arith.truncf %150 : vector<16x32xf32> to vector<16x32xbf16>
      %c0_95 = arith.constant 0 : index
      %c0_96 = arith.constant 0 : index
      %152 = vector.load %arg15[%c0_95, %c0_96] : memref<16x32xbf16, #tpu.memory_space<vmem>>, vector<16x32xbf16>
      tpu.vector_store %arg15[%c0_95, %c0_96], %151 {strides = array<i32>} : memref<16x32xbf16, #tpu.memory_space<vmem>>, vector<16x32xbf16>,
      %153 = vector.extract_strided_slice %149 {offsets = [0, 32], sizes = [16, 32], strides = [1, 1]} : vector<16x64xf32> to vector<16x32xf32>
      %154 = arith.truncf %153 : vector<16x32xf32> to vector<16x32xbf16>
      %c0_97 = arith.constant 0 : index
      %c0_98 = arith.constant 0 : index
      %155 = vector.load %arg16[%c0_97, %c0_98] : memref<16x32xbf16, #tpu.memory_space<vmem>>, vector<16x32xbf16>
      tpu.vector_store %arg16[%c0_97, %c0_98], %154 {strides = array<i32>} : memref<16x32xbf16, #tpu.memory_space<vmem>>, vector<16x32xbf16>,
    } else {
    }
    %c0 = arith.constant 0 : index
    %c0_1 = arith.constant 0 : index
    %c0_2 = arith.constant 0 : index
    %3 = vector.load %arg2[%c0, %c0_1, %c0_2] : memref<1x8x32xf32, #tpu.memory_space<vmem>>, vector<1x8x32xf32>
    %4 = vector.shape_cast %3 : vector<1x8x32xf32> to vector<8x32xf32>
    %5 = arith.mulf %4, %4 : vector<8x32xf32>
    %cst = arith.constant dense<0.000000e+00> : vector<8xf32>
    %6 = vector.multi_reduction <add>, %5, %cst [1] : vector<8x32xf32> to vector<8xf32>
    %7 = vector.shape_cast %6 : vector<8xf32> to vector<8x1xf32>
    %cst_3 = arith.constant 3.200000e+01 : f32
    %8 = vector.broadcast %cst_3 : f32 to vector<8x1xf32>
    %9 = arith.divf %7, %8 : vector<8x1xf32>
    %cst_4 = arith.constant 9.99999974E-6 : f32
    %10 = vector.broadcast %cst_4 : f32 to vector<8x1xf32>
    %11 = arith.addf %9, %10 : vector<8x1xf32>
    %12 = math.rsqrt %11 : vector<8x1xf32>
    %13 = vector.broadcast %12 : vector<8x1xf32> to vector<8x32xf32>
    %14 = arith.mulf %4, %13 : vector<8x32xf32>
    %15 = arith.truncf %14 : vector<8x32xf32> to vector<8x32xbf16>
    %c0_5 = arith.constant 0 : index
    %c0_6 = arith.constant 0 : index
    %16 = vector.load %arg6[%c0_5, %c0_6] : memref<32x32xbf16, #tpu.memory_space<vmem>>, vector<32x32xbf16>
    %cst_7 = arith.constant dense<0.000000e+00> : vector<8x32xf32>
    %17 = tpu.matmul %15, %16, %cst_7 {dimension_numbers = #tpu.dot_dimension_numbers<[1], [0], [0], [1], [0, 0, 1, 1], [], []>} : vector<8x32xbf16>, vector<32x32xbf16>, vector<8x32xf32> -> vector<8x32xf32>
    %c0_8 = arith.constant 0 : index
    %c0_9 = arith.constant 0 : index
    %18 = vector.load %arg7[%c0_8, %c0_9] : memref<1x32xf32, #tpu.memory_space<vmem>>, vector<1x32xf32>
    %19 = vector.broadcast %18 : vector<1x32xf32> to vector<8x32xf32>
    %20 = arith.addf %17, %19 : vector<8x32xf32>
    %21 = arith.truncf %20 : vector<8x32xf32> to vector<8x32xbf16>
    %c0_10 = arith.constant 0 : index
    %c0_11 = arith.constant 0 : index
    %22 = vector.load %arg17[%c0_10, %c0_11] : memref<8x32xbf16, #tpu.memory_space<vmem>>, vector<8x32xbf16>
    tpu.vector_store %arg17[%c0_10, %c0_11], %21 {strides = array<i32>} : memref<8x32xbf16, #tpu.memory_space<vmem>>, vector<8x32xbf16>,
    %c0_12 = arith.constant 0 : index
    %c0_13 = arith.constant 0 : index
    %23 = vector.load %arg17[%c0_12, %c0_13] : memref<8x32xbf16, #tpu.memory_space<vmem>>, vector<8x8xbf16>
    %c0_14 = arith.constant 0 : index
    %c0_15 = arith.constant 0 : index
    %24 = vector.load %arg15[%c0_14, %c0_15] : memref<16x32xbf16, #tpu.memory_space<vmem>>, vector<16x8xbf16>
    %cst_16 = arith.constant dense<0.000000e+00> : vector<8x16xf32>
    %25 = tpu.matmul %23, %24, %cst_16 {dimension_numbers = #tpu.dot_dimension_numbers<[1], [1], [0], [0], [0, 0, 1, 0], [], []>} : vector<8x8xbf16>, vector<16x8xbf16>, vector<8x16xf32> -> vector<8x16xf32>
    %cst_17 = arith.constant dense<0xFF800000> : vector<8xf32>
    %26 = vector.multi_reduction <maximumf>, %25, %cst_17 [1] : vector<8x16xf32> to vector<8xf32>
    %27 = vector.shape_cast %26 : vector<8xf32> to vector<8x1xf32>
    %28 = vector.broadcast %27 : vector<8x1xf32> to vector<8x16xf32>
    %29 = arith.subf %25, %28 : vector<8x16xf32>
    %30 = math.exp %29 : vector<8x16xf32>
    %31 = arith.truncf %30 : vector<8x16xf32> to vector<8x16xbf16>
    %c0_18 = arith.constant 0 : index
    %c0_19 = arith.constant 0 : index
    %32 = vector.load %arg16[%c0_18, %c0_19] : memref<16x32xbf16, #tpu.memory_space<vmem>>, vector<16x8xbf16>
    %cst_20 = arith.constant dense<0.000000e+00> : vector<8x8xf32>
    %33 = tpu.matmul %31, %32, %cst_20 {dimension_numbers = #tpu.dot_dimension_numbers<[1], [0], [0], [1], [0, 0, 1, 1], [], []>} : vector<8x16xbf16>, vector<16x8xbf16>, vector<8x8xf32> -> vector<8x8xf32>
    %cst_21 = arith.constant dense<0.000000e+00> : vector<8xf32>
    %34 = vector.multi_reduction <add>, %30, %cst_21 [1] : vector<8x16xf32> to vector<8xf32>
    %35 = vector.shape_cast %34 : vector<8xf32> to vector<8x1xf32>
    %36 = tpu.reciprocal %35 : vector<8x1xf32> -> vector<8x1xf32>
    %37 = vector.broadcast %36 : vector<8x1xf32> to vector<8x8xf32>
    %38 = arith.mulf %33, %37 : vector<8x8xf32>
    %39 = arith.truncf %38 : vector<8x8xf32> to vector<8x8xbf16>
    %c0_22 = arith.constant 0 : index
    %c0_23 = arith.constant 0 : index
    %40 = vector.load %arg18[%c0_22, %c0_23] : memref<8x32xbf16, #tpu.memory_space<vmem>>, vector<8x8xbf16>
    tpu.vector_store %arg18[%c0_22, %c0_23], %39 {strides = array<i32>} : memref<8x32xbf16, #tpu.memory_space<vmem>>, vector<8x8xbf16>,
    %c0_24 = arith.constant 0 : index
    %c8 = arith.constant 8 : index
    %41 = vector.load %arg17[%c0_24, %c8] : memref<8x32xbf16, #tpu.memory_space<vmem>>, vector<8x8xbf16>
    %c0_25 = arith.constant 0 : index
    %c8_26 = arith.constant 8 : index
    %42 = vector.load %arg15[%c0_25, %c8_26] : memref<16x32xbf16, #tpu.memory_space<vmem>>, vector<16x8xbf16>
    %cst_27 = arith.constant dense<0.000000e+00> : vector<8x16xf32>
    %43 = tpu.matmul %41, %42, %cst_27 {dimension_numbers = #tpu.dot_dimension_numbers<[1], [1], [0], [0], [0, 0, 1, 0], [], []>} : vector<8x8xbf16>, vector<16x8xbf16>, vector<8x16xf32> -> vector<8x16xf32>
    %cst_28 = arith.constant dense<0xFF800000> : vector<8xf32>
    %44 = vector.multi_reduction <maximumf>, %43, %cst_28 [1] : vector<8x16xf32> to vector<8xf32>
    %45 = vector.shape_cast %44 : vector<8xf32> to vector<8x1xf32>
    %46 = vector.broadcast %45 : vector<8x1xf32> to vector<8x16xf32>
    %47 = arith.subf %43, %46 : vector<8x16xf32>
    %48 = math.exp %47 : vector<8x16xf32>
    %49 = arith.truncf %48 : vector<8x16xf32> to vector<8x16xbf16>
    %c0_29 = arith.constant 0 : index
    %c8_30 = arith.constant 8 : index
    %50 = vector.load %arg16[%c0_29, %c8_30] : memref<16x32xbf16, #tpu.memory_space<vmem>>, vector<16x8xbf16>
    %cst_31 = arith.constant dense<0.000000e+00> : vector<8x8xf32>
    %51 = tpu.matmul %49, %50, %cst_31 {dimension_numbers = #tpu.dot_dimension_numbers<[1], [0], [0], [1], [0, 0, 1, 1], [], []>} : vector<8x16xbf16>, vector<16x8xbf16>, vector<8x8xf32> -> vector<8x8xf32>
    %cst_32 = arith.constant dense<0.000000e+00> : vector<8xf32>
    %52 = vector.multi_reduction <add>, %48, %cst_32 [1] : vector<8x16xf32> to vector<8xf32>
    %53 = vector.shape_cast %52 : vector<8xf32> to vector<8x1xf32>
    %54 = tpu.reciprocal %53 : vector<8x1xf32> -> vector<8x1xf32>
    %55 = vector.broadcast %54 : vector<8x1xf32> to vector<8x8xf32>
    %56 = arith.mulf %51, %55 : vector<8x8xf32>
    %57 = arith.truncf %56 : vector<8x8xf32> to vector<8x8xbf16>
    %c0_33 = arith.constant 0 : index
    %c8_34 = arith.constant 8 : index
    %58 = vector.load %arg18[%c0_33, %c8_34] : memref<8x32xbf16, #tpu.memory_space<vmem>>, vector<8x8xbf16>
    tpu.vector_store %arg18[%c0_33, %c8_34], %57 {strides = array<i32>} : memref<8x32xbf16, #tpu.memory_space<vmem>>, vector<8x8xbf16>,
    %c0_35 = arith.constant 0 : index
    %c16 = arith.constant 16 : index
    %59 = vector.load %arg17[%c0_35, %c16] : memref<8x32xbf16, #tpu.memory_space<vmem>>, vector<8x8xbf16>
    %c0_36 = arith.constant 0 : index
    %c16_37 = arith.constant 16 : index
    %60 = vector.load %arg15[%c0_36, %c16_37] : memref<16x32xbf16, #tpu.memory_space<vmem>>, vector<16x8xbf16>
    %cst_38 = arith.constant dense<0.000000e+00> : vector<8x16xf32>
    %61 = tpu.matmul %59, %60, %cst_38 {dimension_numbers = #tpu.dot_dimension_numbers<[1], [1], [0], [0], [0, 0, 1, 0], [], []>} : vector<8x8xbf16>, vector<16x8xbf16>, vector<8x16xf32> -> vector<8x16xf32>
    %cst_39 = arith.constant dense<0xFF800000> : vector<8xf32>
    %62 = vector.multi_reduction <maximumf>, %61, %cst_39 [1] : vector<8x16xf32> to vector<8xf32>
    %63 = vector.shape_cast %62 : vector<8xf32> to vector<8x1xf32>
    %64 = vector.broadcast %63 : vector<8x1xf32> to vector<8x16xf32>
    %65 = arith.subf %61, %64 : vector<8x16xf32>
    %66 = math.exp %65 : vector<8x16xf32>
    %67 = arith.truncf %66 : vector<8x16xf32> to vector<8x16xbf16>
    %c0_40 = arith.constant 0 : index
    %c16_41 = arith.constant 16 : index
    %68 = vector.load %arg16[%c0_40, %c16_41] : memref<16x32xbf16, #tpu.memory_space<vmem>>, vector<16x8xbf16>
    %cst_42 = arith.constant dense<0.000000e+00> : vector<8x8xf32>
    %69 = tpu.matmul %67, %68, %cst_42 {dimension_numbers = #tpu.dot_dimension_numbers<[1], [0], [0], [1], [0, 0, 1, 1], [], []>} : vector<8x16xbf16>, vector<16x8xbf16>, vector<8x8xf32> -> vector<8x8xf32>
    %cst_43 = arith.constant dense<0.000000e+00> : vector<8xf32>
    %70 = vector.multi_reduction <add>, %66, %cst_43 [1] : vector<8x16xf32> to vector<8xf32>
    %71 = vector.shape_cast %70 : vector<8xf32> to vector<8x1xf32>
    %72 = tpu.reciprocal %71 : vector<8x1xf32> -> vector<8x1xf32>
    %73 = vector.broadcast %72 : vector<8x1xf32> to vector<8x8xf32>
    %74 = arith.mulf %69, %73 : vector<8x8xf32>
    %75 = arith.truncf %74 : vector<8x8xf32> to vector<8x8xbf16>
    %c0_44 = arith.constant 0 : index
    %c16_45 = arith.constant 16 : index
    %76 = vector.load %arg18[%c0_44, %c16_45] : memref<8x32xbf16, #tpu.memory_space<vmem>>, vector<8x8xbf16>
    tpu.vector_store %arg18[%c0_44, %c16_45], %75 {strides = array<i32>} : memref<8x32xbf16, #tpu.memory_space<vmem>>, vector<8x8xbf16>,
    %c0_46 = arith.constant 0 : index
    %c24 = arith.constant 24 : index
    %77 = vector.load %arg17[%c0_46, %c24] : memref<8x32xbf16, #tpu.memory_space<vmem>>, vector<8x8xbf16>
    %c0_47 = arith.constant 0 : index
    %c24_48 = arith.constant 24 : index
    %78 = vector.load %arg15[%c0_47, %c24_48] : memref<16x32xbf16, #tpu.memory_space<vmem>>, vector<16x8xbf16>
    %cst_49 = arith.constant dense<0.000000e+00> : vector<8x16xf32>
    %79 = tpu.matmul %77, %78, %cst_49 {dimension_numbers = #tpu.dot_dimension_numbers<[1], [1], [0], [0], [0, 0, 1, 0], [], []>} : vector<8x8xbf16>, vector<16x8xbf16>, vector<8x16xf32> -> vector<8x16xf32>
    %cst_50 = arith.constant dense<0xFF800000> : vector<8xf32>
    %80 = vector.multi_reduction <maximumf>, %79, %cst_50 [1] : vector<8x16xf32> to vector<8xf32>
    %81 = vector.shape_cast %80 : vector<8xf32> to vector<8x1xf32>
    %82 = vector.broadcast %81 : vector<8x1xf32> to vector<8x16xf32>
    %83 = arith.subf %79, %82 : vector<8x16xf32>
    %84 = math.exp %83 : vector<8x16xf32>
    %85 = arith.truncf %84 : vector<8x16xf32> to vector<8x16xbf16>
    %c0_51 = arith.constant 0 : index
    %c24_52 = arith.constant 24 : index
    %86 = vector.load %arg16[%c0_51, %c24_52] : memref<16x32xbf16, #tpu.memory_space<vmem>>, vector<16x8xbf16>
    %cst_53 = arith.constant dense<0.000000e+00> : vector<8x8xf32>
    %87 = tpu.matmul %85, %86, %cst_53 {dimension_numbers = #tpu.dot_dimension_numbers<[1], [0], [0], [1], [0, 0, 1, 1], [], []>} : vector<8x16xbf16>, vector<16x8xbf16>, vector<8x8xf32> -> vector<8x8xf32>
    %cst_54 = arith.constant dense<0.000000e+00> : vector<8xf32>
    %88 = vector.multi_reduction <add>, %84, %cst_54 [1] : vector<8x16xf32> to vector<8xf32>
    %89 = vector.shape_cast %88 : vector<8xf32> to vector<8x1xf32>
    %90 = tpu.reciprocal %89 : vector<8x1xf32> -> vector<8x1xf32>
    %91 = vector.broadcast %90 : vector<8x1xf32> to vector<8x8xf32>
    %92 = arith.mulf %87, %91 : vector<8x8xf32>
    %93 = arith.truncf %92 : vector<8x8xf32> to vector<8x8xbf16>
    %c0_55 = arith.constant 0 : index
    %c24_56 = arith.constant 24 : index
    %94 = vector.load %arg18[%c0_55, %c24_56] : memref<8x32xbf16, #tpu.memory_space<vmem>>, vector<8x8xbf16>
    tpu.vector_store %arg18[%c0_55, %c24_56], %93 {strides = array<i32>} : memref<8x32xbf16, #tpu.memory_space<vmem>>, vector<8x8xbf16>,
    %c0_57 = arith.constant 0 : index
    %c0_58 = arith.constant 0 : index
    %c0_59 = arith.constant 0 : index
    %95 = vector.load %arg2[%c0_57, %c0_58, %c0_59] : memref<1x8x32xf32, #tpu.memory_space<vmem>>, vector<1x8x32xf32>
    %96 = vector.shape_cast %95 : vector<1x8x32xf32> to vector<8x32xf32>
    %c0_60 = arith.constant 0 : index
    %c0_61 = arith.constant 0 : index
    %97 = vector.load %arg18[%c0_60, %c0_61] : memref<8x32xbf16, #tpu.memory_space<vmem>>, vector<8x32xbf16>
    %c0_62 = arith.constant 0 : index
    %c0_63 = arith.constant 0 : index
    %98 = vector.load %arg8[%c0_62, %c0_63] : memref<32x32xbf16, #tpu.memory_space<vmem>>, vector<32x32xbf16>
    %cst_64 = arith.constant dense<0.000000e+00> : vector<8x32xf32>
    %99 = tpu.matmul %97, %98, %cst_64 {dimension_numbers = #tpu.dot_dimension_numbers<[1], [0], [0], [1], [0, 0, 1, 1], [], []>} : vector<8x32xbf16>, vector<32x32xbf16>, vector<8x32xf32> -> vector<8x32xf32>
    %100 = arith.addf %96, %99 : vector<8x32xf32>
    %c0_65 = arith.constant 0 : index
    %c0_66 = arith.constant 0 : index
    %101 = vector.load %arg9[%c0_65, %c0_66] : memref<1x32xf32, #tpu.memory_space<vmem>>, vector<1x32xf32>
    %102 = vector.broadcast %101 : vector<1x32xf32> to vector<8x32xf32>
    %103 = arith.addf %100, %102 : vector<8x32xf32>
    %104 = arith.mulf %103, %103 : vector<8x32xf32>
    %cst_67 = arith.constant dense<0.000000e+00> : vector<8xf32>
    %105 = vector.multi_reduction <add>, %104, %cst_67 [1] : vector<8x32xf32> to vector<8xf32>
    %106 = vector.shape_cast %105 : vector<8xf32> to vector<8x1xf32>
    %cst_68 = arith.constant 3.200000e+01 : f32
    %107 = vector.broadcast %cst_68 : f32 to vector<8x1xf32>
    %108 = arith.divf %106, %107 : vector<8x1xf32>
    %cst_69 = arith.constant 9.99999974E-6 : f32
    %109 = vector.broadcast %cst_69 : f32 to vector<8x1xf32>
    %110 = arith.addf %108, %109 : vector<8x1xf32>
    %111 = math.rsqrt %110 : vector<8x1xf32>
    %112 = vector.broadcast %111 : vector<8x1xf32> to vector<8x32xf32>
    %113 = arith.mulf %103, %112 : vector<8x32xf32>
    %114 = arith.truncf %113 : vector<8x32xf32> to vector<8x32xbf16>
    %c0_70 = arith.constant 0 : index
    %c0_71 = arith.constant 0 : index
    %115 = vector.load %arg10[%c0_70, %c0_71] : memref<32x128xbf16, #tpu.memory_space<vmem>>, vector<32x128xbf16>
    %cst_72 = arith.constant dense<0.000000e+00> : vector<8x128xf32>
    %116 = tpu.matmul %114, %115, %cst_72 {dimension_numbers = #tpu.dot_dimension_numbers<[1], [0], [0], [1], [0, 0, 1, 1], [], []>} : vector<8x32xbf16>, vector<32x128xbf16>, vector<8x128xf32> -> vector<8x128xf32>
    %c0_73 = arith.constant 0 : index
    %c0_74 = arith.constant 0 : index
    %117 = vector.load %arg11[%c0_73, %c0_74] : memref<1x128xf32, #tpu.memory_space<vmem>>, vector<1x128xf32>
    %118 = vector.broadcast %117 : vector<1x128xf32> to vector<8x128xf32>
    %119 = arith.addf %116, %118 : vector<8x128xf32>
    %120 = arith.mulf %119, %119 : vector<8x128xf32>
    %121 = arith.mulf %119, %120 : vector<8x128xf32>
    %cst_75 = arith.constant 4.471500e-02 : f32
    %122 = vector.broadcast %cst_75 : f32 to vector<8x128xf32>
    %123 = arith.mulf %122, %121 : vector<8x128xf32>
    %124 = arith.addf %119, %123 : vector<8x128xf32>
    %cst_76 = arith.constant 0.797884583 : f32
    %125 = vector.broadcast %cst_76 : f32 to vector<8x128xf32>
    %126 = arith.mulf %125, %124 : vector<8x128xf32>
    %127 = math.tanh %126 : vector<8x128xf32>
    %cst_77 = arith.constant 1.000000e+00 : f32
    %128 = vector.broadcast %cst_77 : f32 to vector<8x128xf32>
    %129 = arith.addf %128, %127 : vector<8x128xf32>
    %cst_78 = arith.constant 5.000000e-01 : f32
    %130 = vector.broadcast %cst_78 : f32 to vector<8x128xf32>
    %131 = arith.mulf %130, %129 : vector<8x128xf32>
    %132 = arith.mulf %119, %131 : vector<8x128xf32>
    %133 = arith.truncf %132 : vector<8x128xf32> to vector<8x128xbf16>
    %c0_79 = arith.constant 0 : index
    %c0_80 = arith.constant 0 : index
    %134 = vector.load %arg12[%c0_79, %c0_80] : memref<128x32xbf16, #tpu.memory_space<vmem>>, vector<128x32xbf16>
    %cst_81 = arith.constant dense<0.000000e+00> : vector<8x32xf32>
    %135 = tpu.matmul %133, %134, %cst_81 {dimension_numbers = #tpu.dot_dimension_numbers<[1], [0], [0], [1], [0, 0, 1, 1], [], []>} : vector<8x128xbf16>, vector<128x32xbf16>, vector<8x32xf32> -> vector<8x32xf32>
    %c0_82 = arith.constant 0 : index
    %c0_83 = arith.constant 0 : index
    %136 = vector.load %arg13[%c0_82, %c0_83] : memref<1x32xf32, #tpu.memory_space<vmem>>, vector<1x32xf32>
    %137 = vector.broadcast %136 : vector<1x32xf32> to vector<8x32xf32>
    %138 = arith.addf %135, %137 : vector<8x32xf32>
    %139 = arith.addf %103, %138 : vector<8x32xf32>
    %c0_84 = arith.constant 0 : index
    %c0_85 = arith.constant 0 : index
    %c0_86 = arith.constant 0 : index
    %140 = vector.load %arg14[%c0_84, %c0_85, %c0_86] : memref<1x8x32xf32, #tpu.memory_space<vmem>>, vector<1x8x32xf32>
    %141 = vector.shape_cast %140 : vector<1x8x32xf32> to vector<8x32xf32>
    %142 = vector.shape_cast %139 : vector<8x32xf32> to vector<1x8x32xf32>
    tpu.vector_store %arg14[%c0_84, %c0_85, %c0_86], %142 {strides = array<i32>} : memref<1x8x32xf32, #tpu.memory_space<vmem>>, vector<1x8x32xf32>,
    return
  }
  func.func @transform_0(%arg0: i32, %arg1: i32) -> (i32, i32, i32) {
    %c0_i32 = arith.constant 0 : i32
    %c0_i32_0 = arith.constant 0 : i32
    return %arg0, %arg1, %c0_i32 : i32, i32, i32
  }
  func.func @transform_1(%arg0: i32, %arg1: i32) -> (i32, i32, i32) {
    %c0_i32 = arith.constant 0 : i32
    %c0_i32_0 = arith.constant 0 : i32
    %c0_i32_1 = arith.constant 0 : i32
    return %arg0, %c0_i32, %c0_i32_0 : i32, i32, i32
  }
  func.func @transform_2(%arg0: i32, %arg1: i32) -> (i32, i32) {
    %c0_i32 = arith.constant 0 : i32
    %c0_i32_0 = arith.constant 0 : i32
    %c0_i32_1 = arith.constant 0 : i32
    return %c0_i32, %c0_i32_0 : i32, i32
  }
  func.func @transform_3(%arg0: i32, %arg1: i32) -> (i32, i32) {
    %c0_i32 = arith.constant 0 : i32
    %c0_i32_0 = arith.constant 0 : i32
    %c0_i32_1 = arith.constant 0 : i32
    return %c0_i32, %c0_i32_0 : i32, i32
  }
  func.func @transform_4(%arg0: i32, %arg1: i32) -> (i32, i32) {
    %c0_i32 = arith.constant 0 : i32
    %c0_i32_0 = arith.constant 0 : i32
    %c0_i32_1 = arith.constant 0 : i32
    return %c0_i32, %c0_i32_0 : i32, i32
  }
  func.func @transform_5(%arg0: i32, %arg1: i32) -> (i32, i32) {
    %c0_i32 = arith.constant 0 : i32
    %c0_i32_0 = arith.constant 0 : i32
    %c0_i32_1 = arith.constant 0 : i32
    return %c0_i32, %c0_i32_0 : i32, i32
  }
  func.func @transform_6(%arg0: i32, %arg1: i32) -> (i32, i32) {
    %c0_i32 = arith.constant 0 : i32
    %c0_i32_0 = arith.constant 0 : i32
    %c0_i32_1 = arith.constant 0 : i32
    return %c0_i32, %c0_i32_0 : i32, i32
  }
  func.func @transform_7(%arg0: i32, %arg1: i32) -> (i32, i32) {
    %c0_i32 = arith.constant 0 : i32
    %c0_i32_0 = arith.constant 0 : i32
    %c0_i32_1 = arith.constant 0 : i32
    return %c0_i32, %c0_i32_0 : i32, i32
  }
  func.func @transform_8(%arg0: i32, %arg1: i32) -> (i32, i32) {
    %c0_i32 = arith.constant 0 : i32
    %c0_i32_0 = arith.constant 0 : i32
    %c0_i32_1 = arith.constant 0 : i32
    return %c0_i32, %c0_i32_0 : i32, i32
  }
  func.func @transform_9(%arg0: i32, %arg1: i32) -> (i32, i32) {
    %c0_i32 = arith.constant 0 : i32
    %c0_i32_0 = arith.constant 0 : i32
    %c0_i32_1 = arith.constant 0 : i32
    return %c0_i32, %c0_i32_0 : i32, i32
  }
  func.func @transform_10(%arg0: i32, %arg1: i32) -> (i32, i32) {
    %c0_i32 = arith.constant 0 : i32
    %c0_i32_0 = arith.constant 0 : i32
    %c0_i32_1 = arith.constant 0 : i32
    return %c0_i32, %c0_i32_0 : i32, i32
  }
  func.func @transform_11(%arg0: i32, %arg1: i32) -> (i32, i32) {
    %c0_i32 = arith.constant 0 : i32
    %c0_i32_0 = arith.constant 0 : i32
    %c0_i32_1 = arith.constant 0 : i32
    return %c0_i32, %c0_i32_0 : i32, i32
  }
  func.func @transform_12(%arg0: i32, %arg1: i32) -> (i32, i32, i32) {
    %c0_i32 = arith.constant 0 : i32
    %c0_i32_0 = arith.constant 0 : i32
    return %arg0, %arg1, %c0_i32 : i32, i32, i32
  }
}

</mosaic_0001>

<llo_original>
// kernel: tpu_custom_call.1
$region0: #{tpu_custom_call.1}
  #allocation0 [shape = 'u32[]', space=smem, size = 0x4, offset = 0x4, fixed_abs, tag = 'smem constant byte address 0x4 - core index']
  #allocation1 [shape = 'u32[72,128]{1,0:T(1,128)}', space=vmem, size = 0x9000, scoped, tag = 'internal scratch']
  #allocation2 [shape = 'bf16[16,32]{1,0:T(8,128)(2,1)}', space=vmem, size = 0x1000, scoped, tag = 'scratch operand']
  #allocation3 [shape = 'bf16[16,32]{1,0:T(8,128)(2,1)}', space=vmem, size = 0x1000, scoped, tag = 'scratch operand']
  #allocation4 [shape = 'bf16[8,32]{1,0:T(8,128)(2,1)}', space=vmem, size = 0x800, scoped, tag = 'scratch operand']
  #allocation5 [shape = 'bf16[8,32]{1,0:T(8,128)(2,1)}', space=vmem, size = 0x800, scoped, tag = 'scratch operand']
  %s0 = inlined_call_operand.vmem [shape: f32[2,8,32], index: 0, kind: input, shape index: {}]
  %s1 = inlined_call_operand.vmem [shape: bf16[2,16,48], index: 1, kind: input, shape index: {}]
  %s2 = inlined_call_operand.vmem [shape: bf16[48,64], index: 2, kind: input, shape index: {}]
  %s3 = inlined_call_operand.vmem [shape: f32[1,64], index: 3, kind: input, shape index: {}]
  %s4 = inlined_call_operand.vmem [shape: bf16[32,32], index: 4, kind: input, shape index: {}]
  %s5 = inlined_call_operand.vmem [shape: f32[1,32], index: 5, kind: input, shape index: {}]
  %s6 = inlined_call_operand.hbm [shape: bf16[32,32], index: 6, kind: input, shape index: {}]
  %s7 = inlined_call_operand.vmem [shape: f32[1,32], index: 7, kind: input, shape index: {}]
  %s8 = inlined_call_operand.hbm [shape: bf16[32,128], index: 8, kind: input, shape index: {}]
  %s9 = inlined_call_operand.vmem [shape: f32[1,128], index: 9, kind: input, shape index: {}]
  %s10 = inlined_call_operand.vmem [shape: bf16[128,32], index: 10, kind: input, shape index: {}]
  %s11 = inlined_call_operand.vmem [shape: f32[1,32], index: 11, kind: input, shape index: {}]
  %s12 = inlined_call_operand.hbm [shape: f32[2,8,32], index: 12, kind: output, shape index: {}]
  %s13 = sld [smem:[#allocation0]]
  $region93: #{tpu_custom_call.1} parent=0
    _
  %s15 = ssub.s32 1, %s13
  %s16 = scalar_select 0, %s15, %s13
  $region1: #{tpu_custom_call.1} parent=0
    #allocation6 [shape = 'u8[8192]{0}', space=vmem, size = 0x2000, scoped, tag = 'input window, operand 6, single buffered']
    #allocation7 [shape = 's32[2]{0}', space=sflag, size = 0x8, scoped, tag = 'scoped memory for tpu_custom_call.1']
    #allocation8 [shape = 's32[2]{0}', space=sflag, size = 0x8, scoped, tag = 'scoped memory for tpu_custom_call.1']
    #allocation9 [shape = 'u8[8192]{0}', space=vmem, size = 0x2000, scoped, tag = 'input window, operand 8, single buffered']
    #allocation10 [shape = 's32[1]{0}', space=sflag, size = 0x4, scoped, tag = 'scoped memory for tpu_custom_call.1']
    #allocation11 [shape = 'u8[8192]{0}', space=vmem, size = 0x2000, scoped, tag = 'output window, operand 0']
    %17 = vsyncpa [#allocation7], 0
    %18 = vsyncpa [#allocation10], 0
    %19 = vsyncpa [#allocation8], 0
    %s20 = scalar_lea.sflag [#allocation8], 1
    %21 = vsyncpa %s20, 0
    loop: start=0, step=1, limit=4
    $region2: #{tpu_custom_call.1} parent=1 // loop_pre_header
      _
    $region3: #{tpu_custom_call.1} parent=1 // loop_header
      %s23 = sphi 0, %s27
      %p24 = scmp.ge.s32.totalorder %s23, 4
      %s30 = sphi 0, %s42
      %s31 = sphi 0, %s38
      %s32 = sphi 0, %s30
      %s33 = sphi 0, %s31
      %s34 = sphi 0, %s32
      %s35 = sphi 0, %s33
      %s47 = sphi 0, %s49
      %s50 = sphi 0, %s47
      %s51 = sphi 0, %s50
      %s67 = sphi 0, %s51
      %s73 = sphi 0, %s75
      %s76 = sphi 0, %s73
      %s77 = sphi 0, %s76
      %s93 = sphi 0, %s77
      %s97 = sphi 0, %s97
      %s99 = sphi 0, %s97
      %s100 = sphi 0, %s99
      %s114 = sphi 0, %s100
      %s118 = sphi 0, %s118
      %s120 = sphi 0, %s118
      %s121 = sphi 0, %s120
      %s135 = sphi 0, %s121
      %s139 = sphi 0, %s139
      %s141 = sphi 0, %s139
      %s142 = sphi 0, %s141
      %s156 = sphi 0, %s142
      %s160 = sphi 0, %s160
      %s162 = sphi 0, %s160
      %s163 = sphi 0, %s162
      %s177 = sphi 0, %s163
      %s181 = sphi 0, %s181
      %s183 = sphi 0, %s181
      %s184 = sphi 0, %s183
      %s198 = sphi 0, %s184
      %s202 = sphi 0, %s202
      %s204 = sphi 0, %s202
      %s205 = sphi 0, %s204
      %s219 = sphi 0, %s205
      %s223 = sphi 0, %s223
      %s225 = sphi 0, %s223
      %s226 = sphi 0, %s225
      %s240 = sphi 0, %s226
      %s244 = sphi 0, %s244
      %s246 = sphi 0, %s244
      %s247 = sphi 0, %s246
      %s261 = sphi 0, %s247
      %s265 = sphi 0, %s265
      %s267 = sphi 0, %s265
      %s268 = sphi 0, %s267
      %s282 = sphi 0, %s268
      %s286 = sphi 0, %s286
      %s288 = sphi 0, %s286
      %s289 = sphi 0, %s288
      %s303 = sphi 0, %s289
      %s311 = sphi 0, %s313
      %s314 = sphi 0, %s311
      %s315 = sphi 0, %s314
      %s331 = sphi 0, %s315
    $region4: #{tpu_custom_call.1} parent=1 // loop_header_branch
      %26 = sbr.rel (%p24) target = $region8
    $region5: #{tpu_custom_call.1} parent=1 // loop_body
      %s28 = ssub.s32 %s23, 1
      %s29 = ssub.s32 %s23, 2
      %s36 = sadd.s32 1, %s31
      %p37 = scmp.ge.s32.totalorder %s36, 1
      %s38 = scalar_select %p37, 0, %s36
      %s39 = sadd.s32 1, %s30
      %s40 = scalar_select %p37, %s39, %s30
      %p41 = scmp.ge.s32.totalorder %s40, 2
      %s42 = scalar_select %p41, 0, %s40
      %s43 = ssub.s32 %s30, %s42
      %s44 = ssub.s32 %s31, %s38
      %s45 = sor.u32 %s43, %s44
      %p46 = scmp.eq.s32.totalorder %s45, 0
      %s48 = sadd.s32 %s47, 1
      %s49 = scalar_select %p46, %s47, %s48
      %p52 = pneg %p46
      %p53 = scmp.eq.s32.totalorder %s23, 1
      %p54 = por %p52, %p53
      %p55 = scmp.ne.s32.totalorder %s47, %s50
      %p56 = scmp.eq.s32.totalorder %s23, 0
      %p57 = por %p55, %p56
      %p58 = scmp.ne.s32.totalorder %s47, %s50
      %p59 = scmp.eq.s32.totalorder %s28, 1
      %p60 = por %p58, %p59
      %p61 = scmp.ne.s32.totalorder %s50, %s51
      %p62 = scmp.eq.s32.totalorder %s28, 0
      %p63 = por %p61, %p62
      %p64 = scmp.ne.s32.totalorder %s50, %s51
      %p65 = scmp.eq.s32.totalorder %s29, 1
      %p66 = por %p64, %p65
      %p68 = scmp.ne.s32.totalorder %s51, %s67
      %p69 = scmp.eq.s32.totalorder %s29, 0
      %p70 = por %p68, %p69
      %s71 = ssub.s32 %s30, %s42
      %p72 = scmp.eq.s32.totalorder %s71, 0
      %s74 = sadd.s32 %s73, 1
      %s75 = scalar_select %p72, %s73, %s74
      %p78 = pneg %p72
      %p79 = scmp.eq.s32.totalorder %s23, 1
      %p80 = por %p78, %p79
      %p81 = scmp.ne.s32.totalorder %s73, %s76
      %p82 = scmp.eq.s32.totalorder %s23, 0
      %p83 = por %p81, %p82
      %p84 = scmp.ne.s32.totalorder %s73, %s76
      %p85 = scmp.eq.s32.totalorder %s28, 1
      %p86 = por %p84, %p85
      %p87 = scmp.ne.s32.totalorder %s76, %s77
      %p88 = scmp.eq.s32.totalorder %s28, 0
      %p89 = por %p87, %p88
      %p90 = scmp.ne.s32.totalorder %s76, %s77
      %p91 = scmp.eq.s32.totalorder %s29, 1
      %p92 = por %p90, %p91
      %p94 = scmp.ne.s32.totalorder %s77, %s93
      %p95 = scmp.eq.s32.totalorder %s29, 0
      %p96 = por %p94, %p95
      %s98 = sadd.s32 %s97, 1
      %p101 = scmp.eq.s32.totalorder %s23, 1
      %p102 = scmp.ne.s32.totalorder %s97, %s99
      %p103 = scmp.eq.s32.totalorder %s23, 0
      %p104 = por %p102, %p103
      %p105 = scmp.ne.s32.totalorder %s97, %s99
      %p106 = scmp.eq.s32.totalorder %s28, 1
      %p107 = por %p105, %p106
      %p108 = scmp.ne.s32.totalorder %s99, %s100
      %p109 = scmp.eq.s32.totalorder %s28, 0
      %p110 = por %p108, %p109
      %p111 = scmp.ne.s32.totalorder %s99, %s100
      %p112 = scmp.eq.s32.totalorder %s29, 1
      %p113 = por %p111, %p112
      %p115 = scmp.ne.s32.totalorder %s100, %s114
      %p116 = scmp.eq.s32.totalorder %s29, 0
      %p117 = por %p115, %p116
      %s119 = sadd.s32 %s118, 1
      %p122 = scmp.eq.s32.totalorder %s23, 1
      %p123 = scmp.ne.s32.totalorder %s118, %s120
      %p124 = scmp.eq.s32.totalorder %s23, 0
      %p125 = por %p123, %p124
      %p126 = scmp.ne.s32.totalorder %s118, %s120
      %p127 = scmp.eq.s32.totalorder %s28, 1
      %p128 = por %p126, %p127
      %p129 = scmp.ne.s32.totalorder %s120, %s121
      %p130 = scmp.eq.s32.totalorder %s28, 0
      %p131 = por %p129, %p130
      %p132 = scmp.ne.s32.totalorder %s120, %s121
      %p133 = scmp.eq.s32.totalorder %s29, 1
      %p134 = por %p132, %p133
      %p136 = scmp.ne.s32.totalorder %s121, %s135
      %p137 = scmp.eq.s32.totalorder %s29, 0
      %p138 = por %p136, %p137
      %s140 = sadd.s32 %s139, 1
      %p143 = scmp.eq.s32.totalorder %s23, 1
      %p144 = scmp.ne.s32.totalorder %s139, %s141
      %p145 = scmp.eq.s32.totalorder %s23, 0
      %p146 = por %p144, %p145
      %p147 = scmp.ne.s32.totalorder %s139, %s141
      %p148 = scmp.eq.s32.totalorder %s28, 1
      %p149 = por %p147, %p148
      %p150 = scmp.ne.s32.totalorder %s141, %s142
      %p151 = scmp.eq.s32.totalorder %s28, 0
      %p152 = por %p150, %p151
      %p153 = scmp.ne.s32.totalorder %s141, %s142
      %p154 = scmp.eq.s32.totalorder %s29, 1
      %p155 = por %p153, %p154
      %p157 = scmp.ne.s32.totalorder %s142, %s156
      %p158 = scmp.eq.s32.totalorder %s29, 0
      %p159 = por %p157, %p158
      %s161 = sadd.s32 %s160, 1
      %p164 = scmp.eq.s32.totalorder %s23, 1
      %p165 = scmp.ne.s32.totalorder %s160, %s162
      %p166 = scmp.eq.s32.totalorder %s23, 0
      %p167 = por %p165, %p166
      %p168 = scmp.ne.s32.totalorder %s160, %s162
      %p169 = scmp.eq.s32.totalorder %s28, 1
      %p170 = por %p168, %p169
      %p171 = scmp.ne.s32.totalorder %s162, %s163
      %p172 = scmp.eq.s32.totalorder %s28, 0
      %p173 = por %p171, %p172
      %p174 = scmp.ne.s32.totalorder %s162, %s163
      %p175 = scmp.eq.s32.totalorder %s29, 1
      %p176 = por %p174, %p175
      %p178 = scmp.ne.s32.totalorder %s163, %s177
      %p179 = scmp.eq.s32.totalorder %s29, 0
      %p180 = por %p178, %p179
      %s182 = sadd.s32 %s181, 1
      %p185 = scmp.eq.s32.totalorder %s23, 1
      %p186 = scmp.ne.s32.totalorder %s181, %s183
      %p187 = scmp.eq.s32.totalorder %s23, 0
      %p188 = por %p186, %p187
      %p189 = scmp.ne.s32.totalorder %s181, %s183
      %p190 = scmp.eq.s32.totalorder %s28, 1
      %p191 = por %p189, %p190
      %p192 = scmp.ne.s32.totalorder %s183, %s184
      %p193 = scmp.eq.s32.totalorder %s28, 0
      %p194 = por %p192, %p193
      %p195 = scmp.ne.s32.totalorder %s183, %s184
      %p196 = scmp.eq.s32.totalorder %s29, 1
      %p197 = por %p195, %p196
      %p199 = scmp.ne.s32.totalorder %s184, %s198
      %p200 = scmp.eq.s32.totalorder %s29, 0
      %p201 = por %p199, %p200
      %s203 = sadd.s32 %s202, 1
      %p206 = scmp.eq.s32.totalorder %s23, 1
      %p207 = scmp.ne.s32.totalorder %s202, %s204
      %p208 = scmp.eq.s32.totalorder %s23, 0
      %p209 = por %p207, %p208
      %p210 = scmp.ne.s32.totalorder %s202, %s204
      %p211 = scmp.eq.s32.totalorder %s28, 1
      %p212 = por %p210, %p211
      %p213 = scmp.ne.s32.totalorder %s204, %s205
      %p214 = scmp.eq.s32.totalorder %s28, 0
      %p215 = por %p213, %p214
      %p216 = scmp.ne.s32.totalorder %s204, %s205
      %p217 = scmp.eq.s32.totalorder %s29, 1
      %p218 = por %p216, %p217
      %p220 = scmp.ne.s32.totalorder %s205, %s219
      %p221 = scmp.eq.s32.totalorder %s29, 0
      %p222 = por %p220, %p221
      %s224 = sadd.s32 %s223, 1
      %p227 = scmp.eq.s32.totalorder %s23, 1
      %p228 = scmp.ne.s32.totalorder %s223, %s225
      %p229 = scmp.eq.s32.totalorder %s23, 0
      %p230 = por %p228, %p229
      %p231 = scmp.ne.s32.totalorder %s223, %s225
      %p232 = scmp.eq.s32.totalorder %s28, 1
      %p233 = por %p231, %p232
      %p234 = scmp.ne.s32.totalorder %s225, %s226
      %p235 = scmp.eq.s32.totalorder %s28, 0
      %p236 = por %p234, %p235
      %p237 = scmp.ne.s32.totalorder %s225, %s226
      %p238 = scmp.eq.s32.totalorder %s29, 1
      %p239 = por %p237, %p238
      %p241 = scmp.ne.s32.totalorder %s226, %s240
      %p242 = scmp.eq.s32.totalorder %s29, 0
      %p243 = por %p241, %p242
      %s245 = sadd.s32 %s244, 1
      %p248 = scmp.eq.s32.totalorder %s23, 1
      %p249 = scmp.ne.s32.totalorder %s244, %s246
      %p250 = scmp.eq.s32.totalorder %s23, 0
      %p251 = por %p249, %p250
      %p252 = scmp.ne.s32.totalorder %s244, %s246
      %p253 = scmp.eq.s32.totalorder %s28, 1
      %p254 = por %p252, %p253
      %p255 = scmp.ne.s32.totalorder %s246, %s247
      %p256 = scmp.eq.s32.totalorder %s28, 0
      %p257 = por %p255, %p256
      %p258 = scmp.ne.s32.totalorder %s246, %s247
      %p259 = scmp.eq.s32.totalorder %s29, 1
      %p260 = por %p258, %p259
      %p262 = scmp.ne.s32.totalorder %s247, %s261
      %p263 = scmp.eq.s32.totalorder %s29, 0
      %p264 = por %p262, %p263
      %s266 = sadd.s32 %s265, 1
      %p269 = scmp.eq.s32.totalorder %s23, 1
      %p270 = scmp.ne.s32.totalorder %s265, %s267
      %p271 = scmp.eq.s32.totalorder %s23, 0
      %p272 = por %p270, %p271
      %p273 = scmp.ne.s32.totalorder %s265, %s267
      %p274 = scmp.eq.s32.totalorder %s28, 1
      %p275 = por %p273, %p274
      %p276 = scmp.ne.s32.totalorder %s267, %s268
      %p277 = scmp.eq.s32.totalorder %s28, 0
      %p278 = por %p276, %p277
      %p279 = scmp.ne.s32.totalorder %s267, %s268
      %p280 = scmp.eq.s32.totalorder %s29, 1
      %p281 = por %p279, %p280
      %p283 = scmp.ne.s32.totalorder %s268, %s282
      %p284 = scmp.eq.s32.totalorder %s29, 0
      %p285 = por %p283, %p284
      %s287 = sadd.s32 %s286, 1
      %p290 = scmp.eq.s32.totalorder %s23, 1
      %p291 = scmp.ne.s32.totalorder %s286, %s288
      %p292 = scmp.eq.s32.totalorder %s23, 0
      %p293 = por %p291, %p292
      %p294 = scmp.ne.s32.totalorder %s286, %s288
      %p295 = scmp.eq.s32.totalorder %s28, 1
      %p296 = por %p294, %p295
      %p297 = scmp.ne.s32.totalorder %s288, %s289
      %p298 = scmp.eq.s32.totalorder %s28, 0
      %p299 = por %p297, %p298
      %p300 = scmp.ne.s32.totalorder %s288, %s289
      %p301 = scmp.eq.s32.totalorder %s29, 1
      %p302 = por %p300, %p301
      %p304 = scmp.ne.s32.totalorder %s289, %s303
      %p305 = scmp.eq.s32.totalorder %s29, 0
      %p306 = por %p304, %p305
      %s307 = ssub.s32 %s30, %s42
      %s308 = ssub.s32 %s31, %s38
      %s309 = sor.u32 %s307, %s308
      %p310 = scmp.eq.s32.totalorder %s309, 0
      %s312 = sadd.s32 %s311, 1
      %s313 = scalar_select %p310, %s311, %s312
      %p316 = pneg %p310
      %p317 = scmp.eq.s32.totalorder %s23, 1
      %p318 = por %p316, %p317
      %p319 = scmp.ne.s32.totalorder %s311, %s314
      %p320 = scmp.eq.s32.totalorder %s23, 0
      %p321 = por %p319, %p320
      %p322 = scmp.ne.s32.totalorder %s311, %s314
      %p323 = scmp.eq.s32.totalorder %s28, 1
      %p324 = por %p322, %p323
      %p325 = scmp.ne.s32.totalorder %s314, %s315
      %p326 = scmp.eq.s32.totalorder %s28, 0
      %p327 = por %p325, %p326
      %p328 = scmp.ne.s32.totalorder %s314, %s315
      %p329 = scmp.eq.s32.totalorder %s29, 1
      %p330 = por %p328, %p329
      %p332 = scmp.ne.s32.totalorder %s315, %s331
      %p333 = scmp.eq.s32.totalorder %s29, 0
      %p334 = por %p332, %p333
      %p335 = scmp.le.s32.totalorder 1, %s23
      %p336 = scmp.lt.s32.totalorder %s23, 3
      %p337 = pnand %p335, %p336
      %p338 = pneg %p337
      // Predicated region
      $region9: #{tpu_custom_call.1} parent=5 // pred_check
        _
      $region10: #{tpu_custom_call.1} parent=5 // pred_check_branch
        %340 = sbr.rel (%p337) target = $region12
      $region11: #{tpu_custom_call.1} parent=5 // pred_region
        %s341 = ssub.s32 %s23, 1
        // Predicated region
        $region13: #{tpu_custom_call.1} parent=11 // pred_check
          %p342 = pneg %p110
        $region14: #{tpu_custom_call.1} parent=11 // pred_check_branch
          %344 = sbr.rel (%p342) target = $region16
        $region15: #{tpu_custom_call.1} parent=11 // pred_region
          _
        $region16: #{tpu_custom_call.1} parent=11 // pred_fallthru
          _
        // Predicated region
        $region17: #{tpu_custom_call.1} parent=11 // pred_check
          %p345 = pneg %p131
        $region18: #{tpu_custom_call.1} parent=11 // pred_check_branch
          %347 = sbr.rel (%p345) target = $region20
        $region19: #{tpu_custom_call.1} parent=11 // pred_region
          _
        $region20: #{tpu_custom_call.1} parent=11 // pred_fallthru
          _
        // Predicated region
        $region21: #{tpu_custom_call.1} parent=11 // pred_check
          %p348 = pneg %p152
        $region22: #{tpu_custom_call.1} parent=11 // pred_check_branch
          %350 = sbr.rel (%p348) target = $region24
        $region23: #{tpu_custom_call.1} parent=11 // pred_region
          _
        $region24: #{tpu_custom_call.1} parent=11 // pred_fallthru
          _
        // Predicated region
        $region25: #{tpu_custom_call.1} parent=11 // pred_check
          %p351 = pneg %p173
        $region26: #{tpu_custom_call.1} parent=11 // pred_check_branch
          %353 = sbr.rel (%p351) target = $region28
        $region27: #{tpu_custom_call.1} parent=11 // pred_region
          _
        $region28: #{tpu_custom_call.1} parent=11 // pred_fallthru
          _
        // Predicated region
        $region29: #{tpu_custom_call.1} parent=11 // pred_check
          %p354 = pneg %p194
        $region30: #{tpu_custom_call.1} parent=11 // pred_check_branch
          %356 = sbr.rel (%p354) target = $region32
        $region31: #{tpu_custom_call.1} parent=11 // pred_region
          %358 = vsyncadd [#allocation7], 0
          %s359 = sshll.u32 %s6, 4
          %s360 = int_to_ptr.hbm [resolvable:$true] %s359
          %s361 = sshll.u32 [#allocation6], 4
          %s362 = int_to_ptr.vmem [resolvable:$true] %s361
          %367 = dma.hbm_to_vmem [thread:$0]  %s360, 256, %s362, [#allocation7], 64, 64, 4
        $region32: #{tpu_custom_call.1} parent=11 // pred_fallthru
          _
        // Predicated region
        $region33: #{tpu_custom_call.1} parent=11 // pred_check
          %p368 = pneg %p215
        $region34: #{tpu_custom_call.1} parent=11 // pred_check_branch
          %370 = sbr.rel (%p368) target = $region36
        $region35: #{tpu_custom_call.1} parent=11 // pred_region
          _
        $region36: #{tpu_custom_call.1} parent=11 // pred_fallthru
          _
        // Predicated region
        $region37: #{tpu_custom_call.1} parent=11 // pred_check
          %p371 = pneg %p236
        $region38: #{tpu_custom_call.1} parent=11 // pred_check_branch
          %373 = sbr.rel (%p371) target = $region40
        $region39: #{tpu_custom_call.1} parent=11 // pred_region
          %375 = vsyncadd [#allocation10], 0
          %s376 = sshll.u32 %s8, 4
          %s377 = int_to_ptr.hbm [resolvable:$true] %s376
          %s378 = sshll.u32 [#allocation9], 4
          %s379 = int_to_ptr.vmem [resolvable:$true] %s378
          %384 = dma.hbm_to_vmem [thread:$0]  %s377, 256, %s379, [#allocation10], 64, 64, 4
        $region40: #{tpu_custom_call.1} parent=11 // pred_fallthru
          _
        // Predicated region
        $region41: #{tpu_custom_call.1} parent=11 // pred_check
          %p385 = pneg %p257
        $region42: #{tpu_custom_call.1} parent=11 // pred_check_branch
          %387 = sbr.rel (%p385) target = $region44
        $region43: #{tpu_custom_call.1} parent=11 // pred_region
          _
        $region44: #{tpu_custom_call.1} parent=11 // pred_fallthru
          _
        // Predicated region
        $region45: #{tpu_custom_call.1} parent=11 // pred_check
          %p388 = pneg %p278
        $region46: #{tpu_custom_call.1} parent=11 // pred_check_branch
          %390 = sbr.rel (%p388) target = $region48
        $region47: #{tpu_custom_call.1} parent=11 // pred_region
          _
        $region48: #{tpu_custom_call.1} parent=11 // pred_fallthru
          _
        // Predicated region
        $region49: #{tpu_custom_call.1} parent=11 // pred_check
          %p391 = pneg %p299
        $region50: #{tpu_custom_call.1} parent=11 // pred_check_branch
          %393 = sbr.rel (%p391) target = $region52
        $region51: #{tpu_custom_call.1} parent=11 // pred_region
          _
        $region52: #{tpu_custom_call.1} parent=11 // pred_fallthru
          _
      $region12: #{tpu_custom_call.1} parent=5 // pred_fallthru
        _
      %p394 = scmp.lt.s32.totalorder %s23, 2
      // Predicated region
      $region53: #{tpu_custom_call.1} parent=5 // pred_check
        %p395 = pneg %p394
      $region54: #{tpu_custom_call.1} parent=5 // pred_check_branch
        %397 = sbr.rel (%p395) target = $region56
      $region55: #{tpu_custom_call.1} parent=5 // pred_region
        // Predicated region
        $region57: #{tpu_custom_call.1} parent=55 // pred_check
          %p398 = pneg %p57
        $region58: #{tpu_custom_call.1} parent=55 // pred_check_branch
          %400 = sbr.rel (%p398) target = $region60
        $region59: #{tpu_custom_call.1} parent=55 // pred_region
          %p401 = scmp.lt.s32.totalorder %s30, 1
          %s402 = scalar_select %p401, %s30, 1
          %p403 = scmp.lt.s32.totalorder %s31, 0
          %s404 = scalar_select %p403, %s31, 0
          %s405 = sadd.s32 %s404, %s402
          %s406 = smul.addr %s405, 8
          %s407 = scalar_lea.vmem %s0, %s406
        $region60: #{tpu_custom_call.1} parent=55 // pred_fallthru
          _
        // Predicated region
        $region61: #{tpu_custom_call.1} parent=55 // pred_check
          %p408 = pneg %p83
        $region62: #{tpu_custom_call.1} parent=55 // pred_check_branch
          %410 = sbr.rel (%p408) target = $region64
        $region63: #{tpu_custom_call.1} parent=55 // pred_region
          %p411 = scmp.lt.s32.totalorder %s30, 1
          %s412 = scalar_select %p411, %s30, 1
          %s413 = smul.addr %s412, 2
          %s414 = smul.addr %s413, 4
          %s415 = scalar_lea.vmem %s1, %s414
        $region64: #{tpu_custom_call.1} parent=55 // pred_fallthru
          _
      $region56: #{tpu_custom_call.1} parent=5 // pred_fallthru
        _
      %p416 = scmp.le.s32.totalorder 1, %s23
      %p417 = scmp.lt.s32.totalorder %s23, 3
      %p418 = pnand %p416, %p417
      %p419 = pneg %p418
      // Predicated region
      $region65: #{tpu_custom_call.1} parent=5 // pred_check
        _
      $region66: #{tpu_custom_call.1} parent=5 // pred_check_branch
        %421 = sbr.rel (%p418) target = $region68
      $region67: #{tpu_custom_call.1} parent=5 // pred_region
        %s422 = ssub.s32 %s23, 1
        // Predicated region
        $region69: #{tpu_custom_call.1} parent=67 // pred_check
          %p423 = pneg %p194
        $region70: #{tpu_custom_call.1} parent=67 // pred_check_branch
          %425 = sbr.rel (%p423) target = $region72
        $region71: #{tpu_custom_call.1} parent=67 // pred_region
          %427 = dma.done [#allocation7], 256
        $region72: #{tpu_custom_call.1} parent=67 // pred_fallthru
          _
        // Predicated region
        $region73: #{tpu_custom_call.1} parent=67 // pred_check
          %p428 = pneg %p236
        $region74: #{tpu_custom_call.1} parent=67 // pred_check_branch
          %430 = sbr.rel (%p428) target = $region76
        $region75: #{tpu_custom_call.1} parent=67 // pred_region
          %432 = dma.done [#allocation10], 256
        $region76: #{tpu_custom_call.1} parent=67 // pred_fallthru
          _
        %p433 = scmp.lt.s32.totalorder %s32, 1
        %s434 = scalar_select %p433, %s32, 1
        %p435 = scmp.lt.s32.totalorder %s33, 0
        %s436 = scalar_select %p435, %s33, 0
        %s437 = sadd.s32 %s436, %s434
        %s438 = smul.addr %s437, 8
        %s439 = scalar_lea.vmem %s0, %s438
        %p440 = pneg %p63
        %p441 = pneg %p60
        %p442 = scmp.lt.s32.totalorder %s32, 1
        %s443 = scalar_select %p442, %s32, 1
        %s444 = smul.addr %s443, 2
        %s445 = smul.addr %s444, 4
        %s446 = scalar_lea.vmem %s1, %s445
        %p447 = pneg %p89
        %p448 = pneg %p86
        %p449 = pneg %p110
        %p450 = pneg %p107
        %p451 = pneg %p131
        %p452 = pneg %p128
        %p453 = pneg %p152
        %p454 = pneg %p149
        %p455 = pneg %p173
        %p456 = pneg %p170
        %p457 = pneg %p194
        %p458 = pneg %p191
        %p459 = pneg %p215
        %p460 = pneg %p212
        %p461 = pneg %p236
        %p462 = pneg %p233
        %p463 = pneg %p257
        %p464 = pneg %p254
        %p465 = pneg %p278
        %p466 = pneg %p275
        %p467 = pneg %p299
        %p468 = pneg %p296
        %p469 = pneg %p327
        %p470 = pneg %p324
        %s471 = sand.u32 %s314, 1
        %s472 = scalar_lea.sflag [#allocation8], %s471
        %s473 = sand.u32 %s314, 1
        %s474 = smul.addr %s473, 8
        %s475 = scalar_lea.vmem [#allocation11], %s474
        %p476 = scmp.lt.s32.totalorder %s32, 1
        %s477 = scalar_select %p476, %s32, 1
        %p478 = scmp.lt.s32.totalorder %s33, 0
        %s479 = scalar_select %p478, %s33, 0
        %s480 = sadd.s32 %s479, %s477
        %s481 = smul.addr %s480, 8
        %s482 = scalar_lea.vmem %s0, %s481
        %p483 = scmp.lt.s32.totalorder %s32, 1
        %s484 = scalar_select %p483, %s32, 1
        %s485 = smul.addr %s484, 2
        %s486 = smul.addr %s485, 4
        %s487 = scalar_lea.vmem %s1, %s486
        %p489 = scmp.eq.s32.totalorder %s33, 0
        // Predicated region
        $region77: #{tpu_custom_call.1} parent=67 // pred_check
          %p490 = pneg %p489
        $region78: #{tpu_custom_call.1} parent=67 // pred_check_branch
          %492 = sbr.rel (%p490) target = $region80
        $region79: #{tpu_custom_call.1} parent=67 // pred_region
          %v493 = vld [vmem:[%s487] sm:$0xf]
          %v494 = vld [vmem:[%s487 + $0x4] sm:$0xf]
          %v495 = vld [vmem:[%s2] sm:$0xf]
          %v496 = vld [vmem:[%s2 + $0x4] sm:$0xf]
          %v497 = vld [vmem:[%s2 + $0x8] sm:$0xf]
          %v498 = vld [vmem:[%s2 + $0xc] sm:$0xf]
          %v499 = vld [vmem:[%s2 + $0x10] sm:$0xf]
          %v500 = vld [vmem:[%s2 + $0x14] sm:$0xf]
          %v501 = vld [vmem:[%s3] sm:$0x1]
          %v503 = vperm.slane %v501, 0
          %v507 = vunpack.c.l.b16 %v493
          %v508 = vunpack.c.l.b16 %v494
          %v509 = vpack.c.b16 %v508, %v507
          %v516 = vunpack.c.l.b16 %v495
          %v517 = vunpack.c.l.b16 %v496
          %v518 = vunpack.c.l.b16 %v497
          %v519 = vunpack.c.l.b16 %v498
          %v520 = vunpack.c.l.b16 %v499
          %v521 = vunpack.c.l.b16 %v500
          %v522 = vpack.c.b16 %v517, %v516
          %v523 = vpack.c.b16 %v519, %v518
          %v524 = vpack.c.b16 %v521, %v520
          %vm528 = vcmask 392192
          %v530 = vsel %vm528, %v509, 0
          %532 = vmatpush.bf16.msra.mxu0 0
          %533 = vmatpush.bf16.msra.mxu0 0
          %534 = vmatpush.bf16.msra.mxu0 0
          %535 = vmatpush.bf16.msra.mxu0 0
          %536 = vmatpush.bf16.msra.mxu0 0
          %537 = vmatpush.bf16.msra.mxu0 %v524
          %538 = vmatpush.bf16.msra.mxu0 %v523
          %539 = vmatpush.bf16.msra.mxu0 %v522
          %540 = vmatmul.bf16.gmra.mxu0 %v530
          %v541 = vpop.f32.mrf.mxu0
          %v542 = vadd.f32 %v503, %v541
          %v543 = vpop.f32.mrf.mxu0
          %v544 = vadd.f32 %v503, %v543
          %545 = vdwg.mxu0
          %v546 = vpack.c.bf16 %v542, %v542
          %v547 = vpack.c.bf16 %v544, %v544
          %vm548 = vcmask 257024
          %549 = vst.msk [vmem:[#allocation2] sm:$0xf] %vm548, %v546
          %550 = vst.msk [vmem:[#allocation2 + $0x4] sm:$0xf] %vm548, %v547
          %553 = vrot.lane.b32.xlu0 %v546, 96
          %v554 = vpop.permute.xlu0 %553
          %555 = vrot.lane.b32.xlu0 %v547, 96
          %v556 = vpop.permute.xlu0 %555
          %559 = vst.msk [vmem:[#allocation3] sm:$0xf] %vm548, %v554
          %560 = vst.msk [vmem:[#allocation3 + $0x4] sm:$0xf] %vm548, %v556
        $region80: #{tpu_custom_call.1} parent=67 // pred_fallthru
          _
        %v561 = vld [vmem:[%s482] sm:$0xff]
        %v562 = vmul.f32 %v561, %v561
        %vm563 = vcmask 261120
        %v564 = vsel %vm563, %v562, 0.0
        %565 = vadd.xlane.f32.xlu0 %v564
        %v566 = vpop.xlane.xlu0 %565
        %v567 = vrcp.pop 32.0
        %v568 = vmul.f32 32.0, %v567
        %v569 = vsub.f32 1.0, %v568
        %v570 = vmul.f32 %v567, %v569
        %v571 = vadd.f32 %v567, %v570
        %vm572 = vweird.f32 %v567
        %v573 = vsel %vm572, %v567, %v571
        %v574 = vmul.f32 %v566, %v573
        %v575 = vadd.f32 %v574, 1e-05
        %v576 = vrsqrt.pop %v575
        %v577 = vmul.f32 %v576, %v575
        %v578 = vmul.f32 %v577, %v576
        %v579 = vmul.f32 0.5, %v578
        %v580 = vsub.f32 1.5, %v579
        %v581 = vmul.f32 %v576, %v580
        %vm582 = vweird.f32 %v575
        %vm583 = vweird.f32 %v576
        %vm584 = vmor %vm582, %vm583
        %v585 = vsel %vm584, %v576, %v581
        %v586 = vmul.f32 %v561, %v585
        %v587 = vpack.c.bf16 %v586, %v586
        %v588 = vld [vmem:[%s4] sm:$0xf]
        %v589 = vld [vmem:[%s4 + $0x4] sm:$0xf]
        %v590 = vld [vmem:[%s4 + $0x8] sm:$0xf]
        %v591 = vld [vmem:[%s4 + $0xc] sm:$0xf]
        %v592 = vld [vmem:[%s5] sm:$0x1]
        %v594 = vperm.slane %v592, 0
        %v600 = vunpack.c.l.b16 %v588
        %v601 = vunpack.c.l.b16 %v589
        %v602 = vunpack.c.l.b16 %v590
        %v603 = vunpack.c.l.b16 %v591
        %v604 = vpack.c.b16 %v601, %v600
        %v605 = vpack.c.b16 %v603, %v602
        %v609 = vsel %vm563, %v587, 0
        %611 = vmatpush.bf16.msra.mxu0 0
        %612 = vmatpush.bf16.msra.mxu0 0
        %613 = vmatpush.bf16.msra.mxu0 0
        %614 = vmatpush.bf16.msra.mxu0 0
        %615 = vmatpush.bf16.msra.mxu0 0
        %616 = vmatpush.bf16.msra.mxu0 0
        %617 = vmatpush.bf16.msra.mxu0 %v605
        %618 = vmatpush.bf16.msra.mxu0 %v604
        %619 = vmatmul.bf16.gmra.mxu0 %v609
        %v620 = vpop.f32.mrf.mxu0
        %v621 = vadd.f32 %v594, %v620
        %v622 = vpop.f32.mrf.mxu0
        %623 = vdwg.mxu0
        %v624 = vpack.c.bf16 %v621, %v621
        %vm625 = vcmask 257024
        %626 = vst.msk [vmem:[#allocation4] sm:$0xf] %vm625, %v624
        %v627 = vld [vmem:[#allocation4] sm:$0xf]
        %v628 = vld [vmem:[#allocation2] sm:$0xf]
        %v629 = vld [vmem:[#allocation2 + $0x4] sm:$0xf]
        %v632 = vunpack.c.l.b16 %v628
        %v633 = vunpack.c.l.b16 %v629
        %v634 = vpack.c.b16 %v633, %v632
        %vm635 = vcmask 64512
        %v637 = vsel %vm635, %v627, 0
        %v640 = vsel %vm635, %v634, 0
        %642 = vmatpush.bf16.xpose.msra.mxu0 0
        %643 = vmatpush.bf16.xpose.msra.mxu0 0
        %644 = vmatpush.bf16.xpose.msra.mxu0 0
        %645 = vmatpush.bf16.xpose.msra.mxu0 0
        %646 = vmatpush.bf16.xpose.msra.mxu0 0
        %647 = vmatpush.bf16.xpose.msra.mxu0 0
        %648 = vmatpush.bf16.xpose.msra.mxu0 0
        %649 = vmatpush.bf16.xpose.msra.mxu0 %v640
        %650 = vmatmul.bf16.gmra.mxu0 %v637
        %v651 = vpop.f32.mrf.mxu0
        %v652 = vadd.f32 0.0, %v651
        %v653 = vpop.f32.mrf.mxu0
        %654 = vdwg.mxu0
        %vm655 = vcmask 130048
        %v656 = vsel %vm655, %v652, -inf
        %657 = vmax.xlane.f32.xlu0 %v656
        %v658 = vpop.xlane.xlu0 %657
        %v659 = vsub.f32 %v652, %v658
        %v660 = vmul.f32 %v659, 1.442695
        %v661 = vpow.pop %v660
        %v662 = vpack.c.bf16 %v661, %v661
        %v663 = vld [vmem:[#allocation3] sm:$0xf]
        %v664 = vld [vmem:[#allocation3 + $0x4] sm:$0xf]
        %v667 = vunpack.c.l.b16 %v663
        %v668 = vunpack.c.l.b16 %v664
        %v669 = vpack.c.b16 %v668, %v667
        %v672 = vsel %vm655, %v662, 0
        %674 = vmatpush.bf16.msra.mxu0 0
        %675 = vmatpush.bf16.msra.mxu0 0
        %676 = vmatpush.bf16.msra.mxu0 0
        %677 = vmatpush.bf16.msra.mxu0 0
        %678 = vmatpush.bf16.msra.mxu0 0
        %679 = vmatpush.bf16.msra.mxu0 0
        %680 = vmatpush.bf16.msra.mxu0 0
        %681 = vmatpush.bf16.msra.mxu0 %v669
        %682 = vmatmul.bf16.gmra.mxu0 %v672
        %v683 = vpop.f32.mrf.mxu0
        %v684 = vadd.f32 0.0, %v683
        %v685 = vpop.f32.mrf.mxu0
        %686 = vdwg.mxu0
        %v687 = vsel %vm655, %v661, 0.0
        %688 = vadd.xlane.f32.xlu0 %v687
        %v689 = vpop.xlane.xlu0 %688
        %v690 = vrcp.pop %v689
        %v691 = vmul.f32 %v689, %v690
        %v692 = vsub.f32 1.0, %v691
        %v693 = vmul.f32 %v690, %v692
        %v694 = vadd.f32 %v690, %v693
        %vm695 = vweird.f32 %v689
        %vm696 = vweird.f32 %v690
        %vm697 = vmor %vm695, %vm696
        %v698 = vsel %vm697, %v690, %v694
        %v699 = vand.u32 2147483647, %v689
        %vm700 = vcmp.eq.f32.partialorder %v699, 8.507059e+37
        %v701 = vand.u32 %v689, 2147483648
        %v702 = vor.u32 1.1754944e-38, %v701
        %v703 = vsel %vm700, %v702, %v698
        %v704 = vmul.f32 %v684, %v703
        %v705 = vpack.c.bf16 %v704, %v704
        %vm706 = vcmask 60416
        %707 = vst.msk [vmem:[#allocation5] sm:$0xf] %vm706, %v705
        %v708 = vld [vmem:[#allocation4] sm:$0xf]
        %v709 = vld [vmem:[#allocation2] sm:$0xf]
        %v710 = vld [vmem:[#allocation2 + $0x4] sm:$0xf]
        %v712 = vunpack.c.l.b16 %v708
        %v713 = vpack.c.b16 %v712, %v712
        %714 = vrot.lane.b32.xlu0 %v713, 120
        %v715 = vpop.permute.xlu0 %714
        %v718 = vunpack.c.l.b16 %v709
        %v719 = vunpack.c.l.b16 %v710
        %v720 = vpack.c.b16 %v719, %v718
        %721 = vrot.lane.b32.xlu0 %v720, 120
        %v722 = vpop.permute.xlu0 %721
        %v724 = vsel %vm635, %v715, 0
        %v727 = vsel %vm635, %v722, 0
        %729 = vmatpush.bf16.xpose.msra.mxu0 0
        %730 = vmatpush.bf16.xpose.msra.mxu0 0
        %731 = vmatpush.bf16.xpose.msra.mxu0 0
        %732 = vmatpush.bf16.xpose.msra.mxu0 0
        %733 = vmatpush.bf16.xpose.msra.mxu0 0
        %734 = vmatpush.bf16.xpose.msra.mxu0 0
        %735 = vmatpush.bf16.xpose.msra.mxu0 0
        %736 = vmatpush.bf16.xpose.msra.mxu0 %v727
        %737 = vmatmul.bf16.gmra.mxu0 %v724
        %v738 = vpop.f32.mrf.mxu0
        %v739 = vadd.f32 0.0, %v738
        %v740 = vpop.f32.mrf.mxu0
        %741 = vdwg.mxu0
        %v742 = vsel %vm655, %v739, -inf
        %743 = vmax.xlane.f32.xlu0 %v742
        %v744 = vpop.xlane.xlu0 %743
        %v745 = vsub.f32 %v739, %v744
        %v746 = vmul.f32 %v745, 1.442695
        %v747 = vpow.pop %v746
        %v748 = vpack.c.bf16 %v747, %v747
        %v749 = vld [vmem:[#allocation3] sm:$0xf]
        %v750 = vld [vmem:[#allocation3 + $0x4] sm:$0xf]
        %v753 = vunpack.c.l.b16 %v749
        %v754 = vunpack.c.l.b16 %v750
        %v755 = vpack.c.b16 %v754, %v753
        %756 = vrot.lane.b32.xlu0 %v755, 120
        %v757 = vpop.permute.xlu0 %756
        %v760 = vsel %vm655, %v748, 0
        %762 = vmatpush.bf16.msra.mxu0 0
        %763 = vmatpush.bf16.msra.mxu0 0
        %764 = vmatpush.bf16.msra.mxu0 0
        %765 = vmatpush.bf16.msra.mxu0 0
        %766 = vmatpush.bf16.msra.mxu0 0
        %767 = vmatpush.bf16.msra.mxu0 0
        %768 = vmatpush.bf16.msra.mxu0 0
        %769 = vmatpush.bf16.msra.mxu0 %v757
        %770 = vmatmul.bf16.gmra.mxu0 %v760
        %v771 = vpop.f32.mrf.mxu0
        %v772 = vadd.f32 0.0, %v771
        %v773 = vpop.f32.mrf.mxu0
        %774 = vdwg.mxu0
        %v775 = vsel %vm655, %v747, 0.0
        %776 = vadd.xlane.f32.xlu0 %v775
        %v777 = vpop.xlane.xlu0 %776
        %v778 = vrcp.pop %v777
        %v779 = vmul.f32 %v777, %v778
        %v780 = vsub.f32 1.0, %v779
        %v781 = vmul.f32 %v778, %v780
        %v782 = vadd.f32 %v778, %v781
        %vm783 = vweird.f32 %v777
        %vm784 = vweird.f32 %v778
        %vm785 = vmor %vm783, %vm784
        %v786 = vsel %vm785, %v778, %v782
        %v787 = vand.u32 2147483647, %v777
        %vm788 = vcmp.eq.f32.partialorder %v787, 8.507059e+37
        %v789 = vand.u32 %v777, 2147483648
        %v790 = vor.u32 1.1754944e-38, %v789
        %v791 = vsel %vm788, %v790, %v786
        %v792 = vmul.f32 %v772, %v791
        %v793 = vpack.c.bf16 %v792, %v792
        %795 = vrot.lane.b32.xlu0 %v793, 8
        %v796 = vpop.permute.xlu0 %795
        %vm798 = vcmask 126016
        %799 = vst.msk [vmem:[#allocation5] sm:$0xf] %vm798, %v796
        %v800 = vld [vmem:[#allocation4] sm:$0xf]
        %v801 = vld [vmem:[#allocation2] sm:$0xf]
        %v802 = vld [vmem:[#allocation2 + $0x4] sm:$0xf]
        %v804 = vunpack.c.l.b16 %v800
        %v805 = vpack.c.b16 %v804, %v804
        %806 = vrot.lane.b32.xlu0 %v805, 112
        %v807 = vpop.permute.xlu0 %806
        %v810 = vunpack.c.l.b16 %v801
        %v811 = vunpack.c.l.b16 %v802
        %v812 = vpack.c.b16 %v811, %v810
        %813 = vrot.lane.b32.xlu0 %v812, 112
        %v814 = vpop.permute.xlu0 %813
        %v816 = vsel %vm635, %v807, 0
        %v819 = vsel %vm635, %v814, 0
        %821 = vmatpush.bf16.xpose.msra.mxu0 0
        %822 = vmatpush.bf16.xpose.msra.mxu0 0
        %823 = vmatpush.bf16.xpose.msra.mxu0 0
        %824 = vmatpush.bf16.xpose.msra.mxu0 0
        %825 = vmatpush.bf16.xpose.msra.mxu0 0
        %826 = vmatpush.bf16.xpose.msra.mxu0 0
        %827 = vmatpush.bf16.xpose.msra.mxu0 0
        %828 = vmatpush.bf16.xpose.msra.mxu0 %v819
        %829 = vmatmul.bf16.gmra.mxu0 %v816
        %v830 = vpop.f32.mrf.mxu0
        %v831 = vadd.f32 0.0, %v830
        %v832 = vpop.f32.mrf.mxu0
        %833 = vdwg.mxu0
        %v834 = vsel %vm655, %v831, -inf
        %835 = vmax.xlane.f32.xlu0 %v834
        %v836 = vpop.xlane.xlu0 %835
        %v837 = vsub.f32 %v831, %v836
        %v838 = vmul.f32 %v837, 1.442695
        %v839 = vpow.pop %v838
        %v840 = vpack.c.bf16 %v839, %v839
        %v841 = vld [vmem:[#allocation3] sm:$0xf]
        %v842 = vld [vmem:[#allocation3 + $0x4] sm:$0xf]
        %v845 = vunpack.c.l.b16 %v841
        %v846 = vunpack.c.l.b16 %v842
        %v847 = vpack.c.b16 %v846, %v845
        %848 = vrot.lane.b32.xlu0 %v847, 112
        %v849 = vpop.permute.xlu0 %848
        %v852 = vsel %vm655, %v840, 0
        %854 = vmatpush.bf16.msra.mxu0 0
        %855 = vmatpush.bf16.msra.mxu0 0
        %856 = vmatpush.bf16.msra.mxu0 0
        %857 = vmatpush.bf16.msra.mxu0 0
        %858 = vmatpush.bf16.msra.mxu0 0
        %859 = vmatpush.bf16.msra.mxu0 0
        %860 = vmatpush.bf16.msra.mxu0 0
        %861 = vmatpush.bf16.msra.mxu0 %v849
        %862 = vmatmul.bf16.gmra.mxu0 %v852
        %v863 = vpop.f32.mrf.mxu0
        %v864 = vadd.f32 0.0, %v863
        %v865 = vpop.f32.mrf.mxu0
        %866 = vdwg.mxu0
        %v867 = vsel %vm655, %v839, 0.0
        %868 = vadd.xlane.f32.xlu0 %v867
        %v869 = vpop.xlane.xlu0 %868
        %v870 = vrcp.pop %v869
        %v871 = vmul.f32 %v869, %v870
        %v872 = vsub.f32 1.0, %v871
        %v873 = vmul.f32 %v870, %v872
        %v874 = vadd.f32 %v870, %v873
        %vm875 = vweird.f32 %v869
        %vm876 = vweird.f32 %v870
        %vm877 = vmor %vm875, %vm876
        %v878 = vsel %vm877, %v870, %v874
        %v879 = vand.u32 2147483647, %v869
        %vm880 = vcmp.eq.f32.partialorder %v879, 8.507059e+37
        %v881 = vand.u32 %v869, 2147483648
        %v882 = vor.u32 1.1754944e-38, %v881
        %v883 = vsel %vm880, %v882, %v878
        %v884 = vmul.f32 %v864, %v883
        %v885 = vpack.c.bf16 %v884, %v884
        %887 = vrot.lane.b32.xlu0 %v885, 16
        %v888 = vpop.permute.xlu0 %887
        %vm890 = vcmask 191616
        %891 = vst.msk [vmem:[#allocation5] sm:$0xf] %vm890, %v888
        %v892 = vld [vmem:[#allocation4] sm:$0xf]
        %v893 = vld [vmem:[#allocation2] sm:$0xf]
        %v894 = vld [vmem:[#allocation2 + $0x4] sm:$0xf]
        %v896 = vunpack.c.l.b16 %v892
        %v897 = vpack.c.b16 %v896, %v896
        %898 = vrot.lane.b32.xlu0 %v897, 104
        %v899 = vpop.permute.xlu0 %898
        %v902 = vunpack.c.l.b16 %v893
        %v903 = vunpack.c.l.b16 %v894
        %v904 = vpack.c.b16 %v903, %v902
        %905 = vrot.lane.b32.xlu0 %v904, 104
        %v906 = vpop.permute.xlu0 %905
        %v908 = vsel %vm635, %v899, 0
        %v911 = vsel %vm635, %v906, 0
        %913 = vmatpush.bf16.xpose.msra.mxu0 0
        %914 = vmatpush.bf16.xpose.msra.mxu0 0
        %915 = vmatpush.bf16.xpose.msra.mxu0 0
        %916 = vmatpush.bf16.xpose.msra.mxu0 0
        %917 = vmatpush.bf16.xpose.msra.mxu0 0
        %918 = vmatpush.bf16.xpose.msra.mxu0 0
        %919 = vmatpush.bf16.xpose.msra.mxu0 0
        %920 = vmatpush.bf16.xpose.msra.mxu0 %v911
        %921 = vmatmul.bf16.gmra.mxu0 %v908
        %v922 = vpop.f32.mrf.mxu0
        %v923 = vadd.f32 0.0, %v922
        %v924 = vpop.f32.mrf.mxu0
        %925 = vdwg.mxu0
        %v926 = vsel %vm655, %v923, -inf
        %927 = vmax.xlane.f32.xlu0 %v926
        %v928 = vpop.xlane.xlu0 %927
        %v929 = vsub.f32 %v923, %v928
        %v930 = vmul.f32 %v929, 1.442695
        %v931 = vpow.pop %v930
        %v932 = vpack.c.bf16 %v931, %v931
        %v933 = vld [vmem:[#allocation3] sm:$0xf]
        %v934 = vld [vmem:[#allocation3 + $0x4] sm:$0xf]
        %v937 = vunpack.c.l.b16 %v933
        %v938 = vunpack.c.l.b16 %v934
        %v939 = vpack.c.b16 %v938, %v937
        %940 = vrot.lane.b32.xlu0 %v939, 104
        %v941 = vpop.permute.xlu0 %940
        %v944 = vsel %vm655, %v932, 0
        %946 = vmatpush.bf16.msra.mxu0 0
        %947 = vmatpush.bf16.msra.mxu0 0
        %948 = vmatpush.bf16.msra.mxu0 0
        %949 = vmatpush.bf16.msra.mxu0 0
        %950 = vmatpush.bf16.msra.mxu0 0
        %951 = vmatpush.bf16.msra.mxu0 0
        %952 = vmatpush.bf16.msra.mxu0 0
        %953 = vmatpush.bf16.msra.mxu0 %v941
        %954 = vmatmul.bf16.gmra.mxu0 %v944
        %v955 = vpop.f32.mrf.mxu0
        %v956 = vadd.f32 0.0, %v955
        %v957 = vpop.f32.mrf.mxu0
        %958 = vdwg.mxu0
        %v959 = vsel %vm655, %v931, 0.0
        %960 = vadd.xlane.f32.xlu0 %v959
        %v961 = vpop.xlane.xlu0 %960
        %v962 = vrcp.pop %v961
        %v963 = vmul.f32 %v961, %v962
        %v964 = vsub.f32 1.0, %v963
        %v965 = vmul.f32 %v962, %v964
        %v966 = vadd.f32 %v962, %v965
        %vm967 = vweird.f32 %v961
        %vm968 = vweird.f32 %v962
        %vm969 = vmor %vm967, %vm968
        %v970 = vsel %vm969, %v962, %v966
        %v971 = vand.u32 2147483647, %v961
        %vm972 = vcmp.eq.f32.partialorder %v971, 8.507059e+37
        %v973 = vand.u32 %v961, 2147483648
        %v974 = vor.u32 1.1754944e-38, %v973
        %v975 = vsel %vm972, %v974, %v970
        %v976 = vmul.f32 %v956, %v975
        %v977 = vpack.c.bf16 %v976, %v976
        %979 = vrot.lane.b32.xlu0 %v977, 24
        %v980 = vpop.permute.xlu0 %979
        %vm982 = vcmask 257216
        %983 = vst.msk [vmem:[#allocation5] sm:$0xf] %vm982, %v980
        %v984 = vld [vmem:[%s482] sm:$0xff]
        %v985 = vld [vmem:[#allocation5] sm:$0xf]
        %v986 = vld [vmem:[#allocation6] sm:$0xf]
        %v987 = vld [vmem:[#allocation6 + $0x4] sm:$0xf]
        %v988 = vld [vmem:[#allocation6 + $0x8] sm:$0xf]
        %v989 = vld [vmem:[#allocation6 + $0xc] sm:$0xf]
        %v994 = vunpack.c.l.b16 %v986
        %v995 = vunpack.c.l.b16 %v987
        %v996 = vunpack.c.l.b16 %v988
        %v997 = vunpack.c.l.b16 %v989
        %v998 = vpack.c.b16 %v995, %v994
        %v999 = vpack.c.b16 %v997, %v996
        %v1003 = vsel %vm563, %v985, 0
        %1005 = vmatpush.bf16.msra.mxu0 0
        %1006 = vmatpush.bf16.msra.mxu0 0
        %1007 = vmatpush.bf16.msra.mxu0 0
        %1008 = vmatpush.bf16.msra.mxu0 0
        %1009 = vmatpush.bf16.msra.mxu0 0
        %1010 = vmatpush.bf16.msra.mxu0 0
        %1011 = vmatpush.bf16.msra.mxu0 %v999
        %1012 = vmatpush.bf16.msra.mxu0 %v998
        %1013 = vmatmul.bf16.gmra.mxu0 %v1003
        %v1014 = vpop.f32.mrf.mxu0
        %v1015 = vadd.f32 0.0, %v1014
        %v1016 = vpop.f32.mrf.mxu0
        %1017 = vdwg.mxu0
        %v1018 = vadd.f32 %v984, %v1015
        %v1019 = vld [vmem:[%s7] sm:$0x1]
        %v1021 = vperm.slane %v1019, 0
        %v1023 = vadd.f32 %v1018, %v1021
        %v1024 = vmul.f32 %v1023, %v1023
        %v1025 = vsel %vm563, %v1024, 0.0
        %1026 = vadd.xlane.f32.xlu0 %v1025
        %v1027 = vpop.xlane.xlu0 %1026
        %v1028 = vmul.f32 %v1027, %v573
        %v1029 = vadd.f32 %v1028, 1e-05
        %v1030 = vrsqrt.pop %v1029
        %v1031 = vmul.f32 %v1030, %v1029
        %v1032 = vmul.f32 %v1031, %v1030
        %v1033 = vmul.f32 0.5, %v1032
        %v1034 = vsub.f32 1.5, %v1033
        %v1035 = vmul.f32 %v1030, %v1034
        %vm1036 = vweird.f32 %v1029
        %vm1037 = vweird.f32 %v1030
        %vm1038 = vmor %vm1036, %vm1037
        %v1039 = vsel %vm1038, %v1030, %v1035
        %v1040 = vmul.f32 %v1023, %v1039
        %v1041 = vpack.c.bf16 %v1040, %v1040
        %v1042 = vld [vmem:[#allocation9] sm:$0xf]
        %v1043 = vld [vmem:[#allocation9 + $0x4] sm:$0xf]
        %v1044 = vld [vmem:[#allocation9 + $0x8] sm:$0xf]
        %v1045 = vld [vmem:[#allocation9 + $0xc] sm:$0xf]
        %v1046 = vld [vmem:[%s9] sm:$0x1]
        %v1048 = vperm.slane %v1046, 0
        %v1054 = vunpack.c.l.b16 %v1042
        %v1055 = vunpack.c.l.b16 %v1043
        %v1056 = vunpack.c.l.b16 %v1044
        %v1057 = vunpack.c.l.b16 %v1045
        %v1058 = vpack.c.b16 %v1055, %v1054
        %v1059 = vpack.c.b16 %v1057, %v1056
        %v1063 = vsel %vm563, %v1041, 0
        %1065 = vmatpush.bf16.msra.mxu0 0
        %1066 = vmatpush.bf16.msra.mxu0 0
        %1067 = vmatpush.bf16.msra.mxu0 0
        %1068 = vmatpush.bf16.msra.mxu0 0
        %1069 = vmatpush.bf16.msra.mxu0 0
        %1070 = vmatpush.bf16.msra.mxu0 0
        %1071 = vmatpush.bf16.msra.mxu0 %v1059
        %1072 = vmatpush.bf16.msra.mxu0 %v1058
        %1073 = vmatmul.bf16.gmra.mxu0 %v1063
        %v1074 = vpop.f32.mrf.mxu0
        %v1075 = vadd.f32 %v1048, %v1074
        %v1076 = vpop.f32.mrf.mxu0
        %1077 = vdwg.mxu0
        %v1078 = vmul.f32 %v1075, %v1075
        %v1079 = vmul.f32 %v1075, %v1078
        %v1080 = vmul.f32 %v1079, 0.044715
        %v1081 = vadd.f32 %v1075, %v1080
        %v1082 = vmul.f32 %v1081, 0.7978846
        %v1083 = vtanh.pop %v1082
        %v1084 = vadd.f32 %v1083, 1.0
        %v1085 = vmul.f32 %v1084, 0.5
        %v1086 = vmul.f32 %v1075, %v1085
        %v1087 = vpack.c.bf16 %v1086, %v1086
        %v1088 = vld [vmem:[%s10] sm:$0xf]
        %v1089 = vld [vmem:[%s10 + $0x4] sm:$0xf]
        %v1090 = vld [vmem:[%s10 + $0x8] sm:$0xf]
        %v1091 = vld [vmem:[%s10 + $0xc] sm:$0xf]
        %v1092 = vld [vmem:[%s10 + $0x10] sm:$0xf]
        %v1093 = vld [vmem:[%s10 + $0x14] sm:$0xf]
        %v1094 = vld [vmem:[%s10 + $0x18] sm:$0xf]
        %v1095 = vld [vmem:[%s10 + $0x1c] sm:$0xf]
        %v1096 = vld [vmem:[%s10 + $0x20] sm:$0xf]
        %v1097 = vld [vmem:[%s10 + $0x24] sm:$0xf]
        %v1098 = vld [vmem:[%s10 + $0x28] sm:$0xf]
        %v1099 = vld [vmem:[%s10 + $0x2c] sm:$0xf]
        %v1100 = vld [vmem:[%s10 + $0x30] sm:$0xf]
        %v1101 = vld [vmem:[%s10 + $0x34] sm:$0xf]
        %v1102 = vld [vmem:[%s10 + $0x38] sm:$0xf]
        %v1103 = vld [vmem:[%s10 + $0x3c] sm:$0xf]
        %v1104 = vld [vmem:[%s11] sm:$0x1]
        %v1106 = vperm.slane %v1104, 0
        %v1124 = vunpack.c.l.b16 %v1088
        %v1125 = vunpack.c.l.b16 %v1089
        %v1126 = vunpack.c.l.b16 %v1090
        %v1127 = vunpack.c.l.b16 %v1091
        %v1128 = vunpack.c.l.b16 %v1092
        %v1129 = vunpack.c.l.b16 %v1093
        %v1130 = vunpack.c.l.b16 %v1094
        %v1131 = vunpack.c.l.b16 %v1095
        %v1132 = vunpack.c.l.b16 %v1096
        %v1133 = vunpack.c.l.b16 %v1097
        %v1134 = vunpack.c.l.b16 %v1098
        %v1135 = vunpack.c.l.b16 %v1099
        %v1136 = vunpack.c.l.b16 %v1100
        %v1137 = vunpack.c.l.b16 %v1101
        %v1138 = vunpack.c.l.b16 %v1102
        %v1139 = vunpack.c.l.b16 %v1103
        %v1140 = vpack.c.b16 %v1125, %v1124
        %v1141 = vpack.c.b16 %v1127, %v1126
        %v1142 = vpack.c.b16 %v1129, %v1128
        %v1143 = vpack.c.b16 %v1131, %v1130
        %v1144 = vpack.c.b16 %v1133, %v1132
        %v1145 = vpack.c.b16 %v1135, %v1134
        %v1146 = vpack.c.b16 %v1137, %v1136
        %v1147 = vpack.c.b16 %v1139, %v1138
        %1156 = vmatpush.bf16.msra.mxu0 %v1147
        %1157 = vmatpush.bf16.msra.mxu0 %v1146
        %1158 = vmatpush.bf16.msra.mxu0 %v1145
        %1159 = vmatpush.bf16.msra.mxu0 %v1144
        %1160 = vmatpush.bf16.msra.mxu0 %v1143
        %1161 = vmatpush.bf16.msra.mxu0 %v1142
        %1162 = vmatpush.bf16.msra.mxu0 %v1141
        %1163 = vmatpush.bf16.msra.mxu0 %v1140
        %1164 = vmatmul.bf16.gmra.mxu0 %v1087
        %v1165 = vpop.f32.mrf.mxu0
        %v1166 = vadd.f32 %v1106, %v1165
        %v1167 = vpop.f32.mrf.mxu0
        %1168 = vdwg.mxu0
        %v1169 = vadd.f32 %v1023, %v1166
        %1170 = vst.msk [vmem:[%s475] sm:$0xff] %vm563, %v1169
        %s1171 = sand.u32 %s314, 1
        %s1172 = scalar_lea.sflag [#allocation8], %s1171
        %s1173 = sand.u32 %s314, 1
        %s1174 = smul.addr %s1173, 8
        %s1175 = scalar_lea.vmem [#allocation11], %s1174
        // Predicated region
        $region81: #{tpu_custom_call.1} parent=67 // pred_check
          %p1176 = pneg %p324
        $region82: #{tpu_custom_call.1} parent=67 // pred_check_branch
          %1178 = sbr.rel (%p1176) target = $region84
        $region83: #{tpu_custom_call.1} parent=67 // pred_region
          %1180 = vsyncadd %s1172, 0
          %s1181 = sadd.s32 %s33, %s32
          %s1182 = smul.addr %s1181, 8
          %s1183 = scalar_lea.hbm %s12, %s1182
          %s1185 = sshll.u32 %s1175, 4
          %s1186 = int_to_ptr.vmem [resolvable:$true] %s1185
          %s1187 = sshll.u32 %s1183, 4
          %s1188 = int_to_ptr.hbm [resolvable:$true] %s1187
          %1190 = dma.vmem_to_hbm [thread:$0]  %s1186, 128, %s1188, %s1172
        $region84: #{tpu_custom_call.1} parent=67 // pred_fallthru
          _
      $region68: #{tpu_custom_call.1} parent=5 // pred_fallthru
        _
      %p1191 = scmp.le.s32.totalorder 2, %s23
      // Predicated region
      $region85: #{tpu_custom_call.1} parent=5 // pred_check
        %p1192 = pneg %p1191
      $region86: #{tpu_custom_call.1} parent=5 // pred_check_branch
        %1194 = sbr.rel (%p1192) target = $region88
      $region87: #{tpu_custom_call.1} parent=5 // pred_region
        %s1195 = ssub.s32 %s23, 2
        // Predicated region
        $region89: #{tpu_custom_call.1} parent=87 // pred_check
          %p1196 = pneg %p330
        $region90: #{tpu_custom_call.1} parent=87 // pred_check_branch
          %1198 = sbr.rel (%p1196) target = $region92
        $region91: #{tpu_custom_call.1} parent=87 // pred_region
          %s1199 = sand.u32 %s315, 1
          %s1200 = scalar_lea.sflag [#allocation8], %s1199
          %s1201 = sand.u32 %s315, 1
          %s1202 = smul.addr %s1201, 8
          %s1203 = scalar_lea.vmem [#allocation11], %s1202
          %1205 = dma.done %s1200, 128
        $region92: #{tpu_custom_call.1} parent=87 // pred_fallthru
          _
      $region88: #{tpu_custom_call.1} parent=5 // pred_fallthru
        _
    $region6: #{tpu_custom_call.1} parent=1 // loop_footer
      %s27 = sadd.s32 1, %s23
    $region7: #{tpu_custom_call.1} parent=1 // loop_footer_branch
      %22 = sbr.rel target = $region3
    $region8: #{tpu_custom_call.1} parent=1 // loop_exit
      _
    %1206 = vsyncpa [#allocation7], 1
    %s1207 = scalar_lea.sflag [#allocation7], 1
    %1208 = vsyncpa %s1207, 1
    %1209 = vsyncpa [#allocation10], 1
    %1210 = vsyncpa [#allocation8], 1
    %s1211 = scalar_lea.sflag [#allocation8], 1
    %1212 = vsyncpa %s1211, 1

</llo_original>
